<compile_context>
chip_gen: v5e
topology: v5e:2x2
jax: 0.10.0
libtpu: 0.0.40
codegen_flags: <defaults>
</compile_context>

<pallas_src>
import functools
from collections import namedtuple

import jax
import jax.numpy as jnp
from jax.experimental import pallas as pl
from jax.experimental.pallas import tpu as pltpu


# ----------------------------------------------------------------------------
# In-kernel helpers
# ----------------------------------------------------------------------------

def _layernorm(x, g, b, eps):
    # Row-wise LayerNorm, statistics in f32.
    mean = jnp.mean(x, axis=-1, keepdims=True)
    xc = x - mean
    var = jnp.mean(xc * xc, axis=-1, keepdims=True)
    return xc * jax.lax.rsqrt(var + eps) * g + b


# ----------------------------------------------------------------------------
# Fused encoder kernel: one grid step = (one example, one layer)
# ----------------------------------------------------------------------------

def _encoder_layer_kernel(emb_ref, mask_ref, lng_ref, lnb_ref,
                          wqkv_ref, bqkv_ref, wo_ref, bo_ref,
                          ln1g_ref, ln1b_ref, wi_ref, bi_ref, wf_ref, bf_ref,
                          ln2g_ref, ln2b_ref, *refs,
                          S, n_heads, head_dim, ln_eps, output_attentions):
    if output_attentions:
        hid_ref, x0_ref, attn_ref, x_carry = refs
    else:
        hid_ref, x0_ref, x_carry = refs
        attn_ref = None

    H = n_heads * head_dim
    b_idx = pl.program_id(0)   # batch tile (one example)
    l_idx = pl.program_id(1)   # layer

    # Layer 0: fused embedding LayerNorm seeds the VMEM-resident carry and is
    # emitted once as hidden_states[0].
    @pl.when(l_idx == 0)
    def _():
        x0 = _layernorm(emb_ref[...], lng_ref[...], lnb_ref[...], ln_eps)
        x_carry[...] = x0
        x0_ref[...] = x0.astype(x0_ref.dtype)

    x = x_carry[...]                                     # (S, H) f32
    x_bf = x.astype(jnp.bfloat16)

    # ---- fused QKV projection: one (H, 3H) bf16 matmul, f32 accumulation.
    # (1/sqrt(head_dim) is pre-folded into the query weights/bias.)
    qkv = jnp.dot(x_bf, wqkv_ref[0],
                  preferred_element_type=jnp.float32) + bqkv_ref[0]   # (S, 3H)
    q2, k2, v2 = qkv[:, :H], qkv[:, H:2 * H], qkv[:, 2 * H:]

    def split_heads(t):  # (S, H) -> (n_heads, S, head_dim), bf16
        return jnp.stack(
            [t[:, h * head_dim:(h + 1) * head_dim] for h in range(n_heads)],
            axis=0).astype(jnp.bfloat16)

    qh, kh, vh = split_heads(q2), split_heads(k2), split_heads(v2)

    # Additive attention-mask bias for this example: (1, 1, S), broadcast over
    # heads and query positions.
    bias = mask_ref[pl.ds(b_idx, 1), :].reshape(1, 1, S)

    # ---- batched multi-head attention (head axis is the einsum batch dim) ----
    s = jnp.einsum("hqd,hkd->hqk", qh, kh,
                   preferred_element_type=jnp.float32) + bias
    s = s - jnp.max(s, axis=-1, keepdims=True)            # stable softmax (f32)
    e = jnp.exp(s)
    p = e / jnp.sum(e, axis=-1, keepdims=True)             # exact: probs are an output
    if attn_ref is not None:
        attn_ref[0, 0] = p.astype(attn_ref.dtype)          # (n_heads, S, S) bf16
    ctx_h = jnp.einsum("hqk,hkd->hqd", p.astype(jnp.bfloat16), vh,
                       preferred_element_type=jnp.float32)  # (n_heads, S, d)
    ctx = jnp.concatenate([ctx_h[h] for h in range(n_heads)], axis=-1)  # (S, H)

    # ---- attention output proj + residual + LayerNorm (fused epilogue) ------
    attn_out = jnp.dot(ctx.astype(jnp.bfloat16), wo_ref[0],
                       preferred_element_type=jnp.float32) + bo_ref[0]
    x1 = _layernorm(x + attn_out, ln1g_ref[0], ln1b_ref[0], ln_eps)

    # ---- FFN: intermediate GELU + output proj + residual + LayerNorm --------
    # TODO(synk): at real BERT-base sizes on v7x, tile w_i/w_f along the
    # intermediate dim to keep double-buffered weights inside 64 MiB VMEM.
    inter = jnp.dot(x1.astype(jnp.bfloat16), wi_ref[0],
                    preferred_element_type=jnp.float32) + bi_ref[0]
    # TODO(synk): HF BERT uses exact erf GELU; tanh approximation used here.
    inter = jax.nn.gelu(inter, approximate=True)
    ffn_out = jnp.dot(inter.astype(jnp.bfloat16), wf_ref[0],
                      preferred_element_type=jnp.float32) + bf_ref[0]
    x2 = _layernorm(x1 + ffn_out, ln2g_ref[0], ln2b_ref[0], ln_eps)

    x_carry[...] = x2
    hid_ref[0] = x2.astype(hid_ref.dtype)                   # bf16 writeback


def bert_encoder(emb, mask_bias, emb_ln_g, emb_ln_b, enc, *, B, S, n_heads,
                 output_attentions=True, ln_eps=1e-12):
    """Run embedding-LN + all encoder layers in one pallas_call.

    emb:       [B*S, H] f32 raw embedding sum (pre-LayerNorm)
    mask_bias: [B, S]   f32 additive attention mask
    enc:       stacked per-layer params (matmul weights bf16, biases/LN f32)
    Returns (hidden [L, B*S, H] bf16, x0 [B*S, H] f32, attn [L,B,nh,S,S] bf16 | None)
    """
    L, H, _ = enc["w_qkv"].shape
    I = enc["w_i"].shape[2]
    head_dim = H // n_heads

    kernel = functools.partial(
        _encoder_layer_kernel, S=S, n_heads=n_heads, head_dim=head_dim,
        ln_eps=ln_eps, output_attentions=output_attentions)

    per_layer = lambda b, l: (l, 0, 0)
    per_batch = lambda b, l: (b, 0)
    resident = lambda b, l: (0, 0)

    in_specs = [
        pl.BlockSpec((S, H), per_batch),          # emb (per-example tile)
        pl.BlockSpec((B, S), resident),           # additive mask bias (resident)
        pl.BlockSpec((1, H), resident),           # emb_ln_g
        pl.BlockSpec((1, H), resident),           # emb_ln_b
        pl.BlockSpec((1, H, 3 * H), per_layer),   # w_qkv (scale pre-folded)
        pl.BlockSpec((1, 1, 3 * H), per_layer),   # b_qkv
        pl.BlockSpec((1, H, H), per_layer),       # w_o
        pl.BlockSpec((1, 1, H), per_layer),       # b_o
        pl.BlockSpec((1, 1, H), per_layer),       # ln1_g
        pl.BlockSpec((1, 1, H), per_layer),       # ln1_b
        pl.BlockSpec((1, H, I), per_layer),       # w_i
        pl.BlockSpec((1, 1, I), per_layer),       # b_i
        pl.BlockSpec((1, I, H), per_layer),       # w_f
        pl.BlockSpec((1, 1, H), per_layer),       # b_f
        pl.BlockSpec((1, 1, H), per_layer),       # ln2_g
        pl.BlockSpec((1, 1, H), per_layer),       # ln2_b
    ]

    out_shape = [jax.ShapeDtypeStruct((L, B * S, H), jnp.bfloat16),  # per-layer hidden
                 jax.ShapeDtypeStruct((B * S, H), jnp.float32)]      # embedding output (x0)
    out_specs = [pl.BlockSpec((1, S, H), lambda b, l: (l, b, 0)),
                 pl.BlockSpec((S, H), per_batch)]
    if output_attentions:
        out_shape.append(
            jax.ShapeDtypeStruct((L, B, n_heads, S, S), jnp.bfloat16))
        out_specs.append(
            pl.BlockSpec((1, 1, n_heads, S, S), lambda b, l: (l, b, 0, 0, 0)))

    outs = pl.pallas_call(
        kernel,
        out_shape=tuple(out_shape),
        grid=(B, L),                                   # batch-tile (parallel) x layer (carry)
        in_specs=in_specs,
        out_specs=tuple(out_specs),
        scratch_shapes=[pltpu.VMEM((S, H), jnp.float32)],   # per-core activation carry
        compiler_params=pltpu.CompilerParams(
            dimension_semantics=("parallel", "arbitrary"),
            # 48 MiB: headroom on v7x's 64 MiB physical VMEM; fine on v5e/v6e.
            vmem_limit_bytes=48 * 1024 * 1024),
    )(emb, mask_bias, emb_ln_g.reshape(1, H), emb_ln_b.reshape(1, H),
      enc["w_qkv"], enc["b_qkv"], enc["w_o"], enc["b_o"],
      enc["ln1_g"], enc["ln1_b"], enc["w_i"], enc["b_i"],
      enc["w_f"], enc["b_f"], enc["ln2_g"], enc["ln2_b"])

    if output_attentions:
        hidden, x0, attn = outs
    else:
        hidden, x0 = outs
        attn = None
    return hidden, x0, attn


# ----------------------------------------------------------------------------
# Parameter initialization (deterministic, synthetic) + layer stacking
# ----------------------------------------------------------------------------

def init_params(key, *, vocab=128, hidden=32, n_layers=2, n_heads=2,
                inter=64, max_pos=64, type_vocab=2, num_classes=2):
    def nrm(k, shape, std=0.02):
        return std * jax.random.normal(k, shape, dtype=jnp.float32)

    keys = jax.random.split(key, 8 + n_layers)
    params = {
        "n_heads": n_heads,
        "word_emb": nrm(keys[0], (vocab, hidden)),
        "pos_emb": nrm(keys[1], (max_pos, hidden)),
        "type_emb": nrm(keys[2], (type_vocab, hidden)),
        "emb_ln_g": jnp.ones((hidden,), jnp.float32),
        "emb_ln_b": jnp.zeros((hidden,), jnp.float32),
        "wp": nrm(keys[3], (hidden, hidden)),
        "bp": jnp.zeros((hidden,), jnp.float32),
        "wc": nrm(keys[4], (hidden, num_classes)),
        "bc": jnp.zeros((num_classes,), jnp.float32),
        "layers": [],
    }
    for li in range(n_layers):
        lk = jax.random.split(keys[8 + li], 6)
        params["layers"].append({
            "wq": nrm(lk[0], (hidden, hidden)), "bq": jnp.zeros((hidden,), jnp.float32),
            "wk": nrm(lk[1], (hidden, hidden)), "bk": jnp.zeros((hidden,), jnp.float32),
            "wv": nrm(lk[2], (hidden, hidden)), "bv": jnp.zeros((hidden,), jnp.float32),
            "wo": nrm(lk[3], (hidden, hidden)), "bo": jnp.zeros((hidden,), jnp.float32),
            "ln1_g": jnp.ones((hidden,), jnp.float32), "ln1_b": jnp.zeros((hidden,), jnp.float32),
            "wi": nrm(lk[4], (hidden, inter)), "bi": jnp.zeros((inter,), jnp.float32),
            "wf": nrm(lk[5], (inter, hidden)), "bf": jnp.zeros((hidden,), jnp.float32),
            "ln2_g": jnp.ones((hidden,), jnp.float32), "ln2_b": jnp.zeros((hidden,), jnp.float32),
        })
    return params


def prepare_encoder_params(params, n_heads):
    """Stack per-layer weights; fold 1/sqrt(head_dim) into W_q/b_q; bf16 matmul weights."""
    layers = params["layers"]
    H = layers[0]["wq"].shape[0]
    head_dim = H // n_heads
    scale = 1.0 / float(head_dim) ** 0.5

    def stack(name):
        return jnp.stack([ly[name] for ly in layers])

    w_qkv = jnp.stack([
        jnp.concatenate([ly["wq"] * scale, ly["wk"], ly["wv"]], axis=1)
        for ly in layers]).astype(jnp.bfloat16)                       # [L, H, 3H]
    b_qkv = jnp.stack([
        jnp.concatenate([ly["bq"] * scale, ly["bk"], ly["bv"]])[None, :]
        for ly in layers])                                            # [L, 1, 3H]
    return {
        "w_qkv": w_qkv, "b_qkv": b_qkv,
        "w_o": stack("wo").astype(jnp.bfloat16), "b_o": stack("bo")[:, None, :],
        "ln1_g": stack("ln1_g")[:, None, :], "ln1_b": stack("ln1_b")[:, None, :],
        "w_i": stack("wi").astype(jnp.bfloat16), "b_i": stack("bi")[:, None, :],
        "w_f": stack("wf").astype(jnp.bfloat16), "b_f": stack("bf")[:, None, :],
        "ln2_g": stack("ln2_g")[:, None, :], "ln2_b": stack("ln2_b")[:, None, :],
    }


# ----------------------------------------------------------------------------
# PLMVictim.forward equivalent: BERT-for-sequence-classification forward pass
# returning (logits, hidden_states, attentions, pooler_output), mirroring the
# HF SequenceClassifierOutput with output_hidden_states / output_attentions.
# ----------------------------------------------------------------------------

PLMOutput = namedtuple("PLMOutput",
                       ["logits", "hidden_states", "attentions", "pooler_output"])


def plm_victim_forward(params, inputs, output_attentions=True):
    input_ids = inputs["input_ids"]              # [B, S] int32
    attention_mask = inputs["attention_mask"]    # [B, S] int32 {0,1}
    token_type_ids = inputs["token_type_ids"]    # [B, S] int32

    B, S = input_ids.shape
    H = params["word_emb"].shape[1]
    n_heads = params["n_heads"]
    L = len(params["layers"])

    # TODO(synk): embedding gather stays in JAX glue (data-dependent gather at
    # this size has no clean BlockSpec path).
    emb = (jnp.take(params["word_emb"], input_ids, axis=0)
           + params["pos_emb"][:S][None, :, :]
           + jnp.take(params["type_emb"], token_type_ids, axis=0))
    emb = emb.reshape(B * S, H)

    # Additive attention-mask bias [B, S]; row-sliced per example in-kernel.
    mask_bias = (1.0 - attention_mask.astype(jnp.float32)) * -10000.0

    enc = prepare_encoder_params(params, n_heads)
    hidden, x0, attn = bert_encoder(
        emb, mask_bias, params["emb_ln_g"], params["emb_ln_b"], enc,
        B=B, S=S, n_heads=n_heads, output_attentions=output_attentions)

    hidden_states = (x0.reshape(B, S, H),)
    attentions = ()
    for l in range(L):
        hidden_states = hidden_states + (hidden[l].reshape(B, S, H),)
        if output_attentions:
            attentions = attentions + (attn[l],)          # [B, n_heads, S, S]

    # Pooler: tanh(W_p * h_[CLS]) and classifier head -> logits [B, num_classes].
    # Kept in plain JAX: at N=2 / rows=B a Pallas store is >90% lane padding.
    cls = hidden_states[-1][:, 0, :].astype(jnp.float32)
    pooled = jnp.tanh(cls @ params["wp"] + params["bp"])
    logits = pooled @ params["wc"] + params["bc"]

    return PLMOutput(logits=logits, hidden_states=hidden_states,
                     attentions=attentions, pooler_output=pooled)


# ----------------------------------------------------------------------------
# Main
# ----------------------------------------------------------------------------

if __name__ == "__main__":
    key = jax.random.PRNGKey(0)
    pkey, dkey = jax.random.split(key)

    B, S = 2, 8
    VOCAB, HIDDEN, LAYERS, HEADS, INTER, NUM_CLASSES = 128, 32, 2, 2, 64, 2

    params = init_params(pkey, vocab=VOCAB, hidden=HIDDEN, n_layers=LAYERS,
                         n_heads=HEADS, inter=INTER, num_classes=NUM_CLASSES)

    input_ids = jax.random.randint(dkey, (B, S), 0, VOCAB, dtype=jnp.int32)
    attention_mask = jnp.ones((B, S), dtype=jnp.int32)
    # pad out the tail of the second example to exercise the attention mask
    attention_mask = attention_mask.at[1, 6:].set(0)
    token_type_ids = jnp.zeros((B, S), dtype=jnp.int32)

    inputs = {"input_ids": input_ids,
              "attention_mask": attention_mask,
              "token_type_ids": token_type_ids}

    out = plm_victim_forward(params, inputs, output_attentions=True)
    jax.block_until_ready(out.logits)
    jax.block_until_ready(out.pooler_output)
    for h in out.hidden_states:
        jax.block_until_ready(h)
    for a in out.attentions:
        jax.block_until_ready(a)

    assert out.logits.shape == (B, NUM_CLASSES)
    assert len(out.hidden_states) == LAYERS + 1
    assert len(out.attentions) == LAYERS
    assert out.attentions[0].shape == (B, HEADS, S, S)
    assert out.pooler_output.shape == (B, HIDDEN)

    print("KERNEL_OK")
</pallas_src>

<mosaic_0001>
module attributes {stable_mosaic.version = 11 : i64} {
  func.func @_encoder_layer_kernel(%arg0: i32, %arg1: i32, %arg2: memref<8x32xf32, #tpu.memory_space<vmem>>, %arg3: memref<2x8xf32, #tpu.memory_space<vmem>>, %arg4: memref<1x32xf32, #tpu.memory_space<vmem>>, %arg5: memref<1x32xf32, #tpu.memory_space<vmem>>, %arg6: memref<1x32x96xbf16, #tpu.memory_space<vmem>>, %arg7: memref<1x1x96xf32, #tpu.memory_space<vmem>>, %arg8: memref<1x32x32xbf16, #tpu.memory_space<vmem>>, %arg9: memref<1x1x32xf32, #tpu.memory_space<vmem>>, %arg10: memref<1x1x32xf32, #tpu.memory_space<vmem>>, %arg11: memref<1x1x32xf32, #tpu.memory_space<vmem>>, %arg12: memref<1x32x64xbf16, #tpu.memory_space<vmem>>, %arg13: memref<1x1x64xf32, #tpu.memory_space<vmem>>, %arg14: memref<1x64x32xbf16, #tpu.memory_space<vmem>>, %arg15: memref<1x1x32xf32, #tpu.memory_space<vmem>>, %arg16: memref<1x1x32xf32, #tpu.memory_space<vmem>>, %arg17: memref<1x1x32xf32, #tpu.memory_space<vmem>>, %arg18: memref<1x8x32xbf16, #tpu.memory_space<vmem>>, %arg19: memref<8x32xf32, #tpu.memory_space<vmem>>, %arg20: memref<1x1x2x8x8xbf16, #tpu.memory_space<vmem>>, %arg21: memref<8x32xf32, #tpu.memory_space<vmem>>) attributes {dimension_semantics = [#tpu.dimension_semantics<parallel>, #tpu.dimension_semantics<arbitrary>], iteration_bounds = array<i64: 2, 2>, scalar_prefetch = 0 : i64, scratch_operands = 1 : i64, tpu.core_type = #tpu.core_type<tc>, window_params = [{transform_indices = @transform_0, window_bounds = array<i64: 8, 32>}, {pipeline_mode = #tpu.pipeline_mode<synchronous>, transform_indices = @transform_1, window_bounds = array<i64: 2, 8>}, {pipeline_mode = #tpu.pipeline_mode<synchronous>, transform_indices = @transform_2, window_bounds = array<i64: 1, 32>}, {pipeline_mode = #tpu.pipeline_mode<synchronous>, transform_indices = @transform_3, window_bounds = array<i64: 1, 32>}, {transform_indices = @transform_4, window_bounds = array<i64: 1, 32, 96>}, {transform_indices = @transform_5, window_bounds = array<i64: 1, 1, 96>}, {transform_indices = @transform_6, window_bounds = array<i64: 1, 32, 32>}, {transform_indices = @transform_7, window_bounds = array<i64: 1, 1, 32>}, {transform_indices = @transform_8, window_bounds = array<i64: 1, 1, 32>}, {transform_indices = @transform_9, window_bounds = array<i64: 1, 1, 32>}, {transform_indices = @transform_10, window_bounds = array<i64: 1, 32, 64>}, {transform_indices = @transform_11, window_bounds = array<i64: 1, 1, 64>}, {transform_indices = @transform_12, window_bounds = array<i64: 1, 64, 32>}, {transform_indices = @transform_13, window_bounds = array<i64: 1, 1, 32>}, {transform_indices = @transform_14, window_bounds = array<i64: 1, 1, 32>}, {transform_indices = @transform_15, window_bounds = array<i64: 1, 1, 32>}, {transform_indices = @transform_16, window_bounds = array<i64: 1, 8, 32>}, {transform_indices = @transform_17, window_bounds = array<i64: 8, 32>}, {transform_indices = @transform_18, window_bounds = array<i64: 1, 1, 2, 8, 8>}]} {
    %c0_i32 = arith.constant 0 : i32
    %0 = arith.cmpi eq, %arg1, %c0_i32 : i32
    %1 = arith.extui %0 : i1 to i32
    %c0_i32_0 = arith.constant 0 : i32
    %2 = arith.cmpi ne, %1, %c0_i32_0 : i32
    scf.if %2 {
      %c0_70 = arith.constant 0 : index
      %c0_71 = arith.constant 0 : index
      %151 = vector.load %arg2[%c0_70, %c0_71] : memref<8x32xf32, #tpu.memory_space<vmem>>, vector<8x32xf32>
      %c0_72 = arith.constant 0 : index
      %c0_73 = arith.constant 0 : index
      %152 = vector.load %arg4[%c0_72, %c0_73] : memref<1x32xf32, #tpu.memory_space<vmem>>, vector<1x32xf32>
      %c0_74 = arith.constant 0 : index
      %c0_75 = arith.constant 0 : index
      %153 = vector.load %arg5[%c0_74, %c0_75] : memref<1x32xf32, #tpu.memory_space<vmem>>, vector<1x32xf32>
      %cst_76 = arith.constant dense<0.000000e+00> : vector<8xf32>
      %154 = vector.multi_reduction <add>, %151, %cst_76 [1] : vector<8x32xf32> to vector<8xf32>
      %155 = vector.shape_cast %154 : vector<8xf32> to vector<8x1xf32>
      %cst_77 = arith.constant 3.200000e+01 : f32
      %156 = vector.broadcast %cst_77 : f32 to vector<8x1xf32>
      %157 = arith.divf %155, %156 : vector<8x1xf32>
      %158 = vector.broadcast %157 : vector<8x1xf32> to vector<8x32xf32>
      %159 = arith.subf %151, %158 : vector<8x32xf32>
      %160 = arith.mulf %159, %159 : vector<8x32xf32>
      %cst_78 = arith.constant dense<0.000000e+00> : vector<8xf32>
      %161 = vector.multi_reduction <add>, %160, %cst_78 [1] : vector<8x32xf32> to vector<8xf32>
      %162 = vector.shape_cast %161 : vector<8xf32> to vector<8x1xf32>
      %cst_79 = arith.constant 3.200000e+01 : f32
      %163 = vector.broadcast %cst_79 : f32 to vector<8x1xf32>
      %164 = arith.divf %162, %163 : vector<8x1xf32>
      %cst_80 = arith.constant 9.99999996E-13 : f32
      %165 = vector.broadcast %cst_80 : f32 to vector<8x1xf32>
      %166 = arith.addf %164, %165 : vector<8x1xf32>
      %167 = math.rsqrt %166 : vector<8x1xf32>
      %168 = vector.broadcast %167 : vector<8x1xf32> to vector<8x32xf32>
      %169 = arith.mulf %159, %168 : vector<8x32xf32>
      %170 = vector.broadcast %152 : vector<1x32xf32> to vector<8x32xf32>
      %171 = arith.mulf %169, %170 : vector<8x32xf32>
      %172 = vector.broadcast %153 : vector<1x32xf32> to vector<8x32xf32>
      %173 = arith.addf %171, %172 : vector<8x32xf32>
      %c0_81 = arith.constant 0 : index
      %c0_82 = arith.constant 0 : index
      %174 = vector.load %arg21[%c0_81, %c0_82] : memref<8x32xf32, #tpu.memory_space<vmem>>, vector<8x32xf32>
      tpu.vector_store %arg21[%c0_81, %c0_82], %173 {strides = array<i32>} : memref<8x32xf32, #tpu.memory_space<vmem>>, vector<8x32xf32>,
      %c0_83 = arith.constant 0 : index
      %c0_84 = arith.constant 0 : index
      %175 = vector.load %arg19[%c0_83, %c0_84] : memref<8x32xf32, #tpu.memory_space<vmem>>, vector<8x32xf32>
      tpu.vector_store %arg19[%c0_83, %c0_84], %173 {strides = array<i32>} : memref<8x32xf32, #tpu.memory_space<vmem>>, vector<8x32xf32>,
    } else {
    }
    %c0 = arith.constant 0 : index
    %c0_1 = arith.constant 0 : index
    %3 = vector.load %arg21[%c0, %c0_1] : memref<8x32xf32, #tpu.memory_space<vmem>>, vector<8x32xf32>
    %4 = arith.truncf %3 : vector<8x32xf32> to vector<8x32xbf16>
    %c0_2 = arith.constant 0 : index
    %c0_3 = arith.constant 0 : index
    %c0_4 = arith.constant 0 : index
    %5 = vector.load %arg6[%c0_2, %c0_3, %c0_4] : memref<1x32x96xbf16, #tpu.memory_space<vmem>>, vector<1x32x96xbf16>
    %6 = vector.shape_cast %5 : vector<1x32x96xbf16> to vector<32x96xbf16>
    %cst = arith.constant dense<0.000000e+00> : vector<8x96xf32>
    %7 = tpu.matmul %4, %6, %cst {dimension_numbers = #tpu.dot_dimension_numbers<[1], [0], [0], [1], [0, 0, 1, 1], [], []>} : vector<8x32xbf16>, vector<32x96xbf16>, vector<8x96xf32> -> vector<8x96xf32>
    %c0_5 = arith.constant 0 : index
    %c0_6 = arith.constant 0 : index
    %c0_7 = arith.constant 0 : index
    %8 = vector.load %arg7[%c0_5, %c0_6, %c0_7] : memref<1x1x96xf32, #tpu.memory_space<vmem>>, vector<1x1x96xf32>
    %9 = vector.shape_cast %8 : vector<1x1x96xf32> to vector<1x96xf32>
    %10 = vector.broadcast %9 : vector<1x96xf32> to vector<8x96xf32>
    %11 = arith.addf %7, %10 : vector<8x96xf32>
    %12 = vector.extract_strided_slice %11 {offsets = [0, 0], sizes = [8, 32], strides = [1, 1]} : vector<8x96xf32> to vector<8x32xf32>
    %13 = vector.extract_strided_slice %11 {offsets = [0, 32], sizes = [8, 32], strides = [1, 1]} : vector<8x96xf32> to vector<8x32xf32>
    %14 = vector.extract_strided_slice %11 {offsets = [0, 64], sizes = [8, 32], strides = [1, 1]} : vector<8x96xf32> to vector<8x32xf32>
    %15 = vector.extract_strided_slice %12 {offsets = [0, 0], sizes = [8, 16], strides = [1, 1]} : vector<8x32xf32> to vector<8x16xf32>
    %16 = vector.extract_strided_slice %12 {offsets = [0, 16], sizes = [8, 16], strides = [1, 1]} : vector<8x32xf32> to vector<8x16xf32>
    %17 = vector.shape_cast %15 : vector<8x16xf32> to vector<1x8x16xf32>
    %18 = vector.shape_cast %16 : vector<8x16xf32> to vector<1x8x16xf32>
    %19 = tpu.concatenate %17, %18 in 0 : vector<1x8x16xf32>, vector<1x8x16xf32> -> vector<2x8x16xf32>
    %20 = arith.truncf %19 : vector<2x8x16xf32> to vector<2x8x16xbf16>
    %21 = vector.extract_strided_slice %13 {offsets = [0, 0], sizes = [8, 16], strides = [1, 1]} : vector<8x32xf32> to vector<8x16xf32>
    %22 = vector.extract_strided_slice %13 {offsets = [0, 16], sizes = [8, 16], strides = [1, 1]} : vector<8x32xf32> to vector<8x16xf32>
    %23 = vector.shape_cast %21 : vector<8x16xf32> to vector<1x8x16xf32>
    %24 = vector.shape_cast %22 : vector<8x16xf32> to vector<1x8x16xf32>
    %25 = tpu.concatenate %23, %24 in 0 : vector<1x8x16xf32>, vector<1x8x16xf32> -> vector<2x8x16xf32>
    %26 = arith.truncf %25 : vector<2x8x16xf32> to vector<2x8x16xbf16>
    %27 = vector.extract_strided_slice %14 {offsets = [0, 0], sizes = [8, 16], strides = [1, 1]} : vector<8x32xf32> to vector<8x16xf32>
    %28 = vector.extract_strided_slice %14 {offsets = [0, 16], sizes = [8, 16], strides = [1, 1]} : vector<8x32xf32> to vector<8x16xf32>
    %29 = vector.shape_cast %27 : vector<8x16xf32> to vector<1x8x16xf32>
    %30 = vector.shape_cast %28 : vector<8x16xf32> to vector<1x8x16xf32>
    %31 = tpu.concatenate %29, %30 in 0 : vector<1x8x16xf32>, vector<1x8x16xf32> -> vector<2x8x16xf32>
    %32 = arith.truncf %31 : vector<2x8x16xf32> to vector<2x8x16xbf16>
    %33 = arith.index_cast %arg0 : i32 to index
    %c0_8 = arith.constant 0 : index
    %34 = vector.load %arg3[%33, %c0_8] : memref<2x8xf32, #tpu.memory_space<vmem>>, vector<1x8xf32>
    %35 = vector.shape_cast %34 : vector<1x8xf32> to vector<1x1x8xf32>
    "tpu.trace_start"() <{level = 10 : i32, message = "hqd,hkd->hqk"}> : () -> ()
    %cst_9 = arith.constant dense<0.000000e+00> : vector<2x8x8xf32>
    %36 = tpu.matmul %20, %26, %cst_9 {dimension_numbers = #tpu.dot_dimension_numbers<[2], [2], [1], [1], [0, 0, 0, 1, 1, 1], [0], [0]>} : vector<2x8x16xbf16>, vector<2x8x16xbf16>, vector<2x8x8xf32> -> vector<2x8x8xf32>
    "tpu.trace_stop"() : () -> ()
    %37 = vector.broadcast %35 : vector<1x1x8xf32> to vector<2x8x8xf32>
    %38 = arith.addf %36, %37 : vector<2x8x8xf32>
    %cst_10 = arith.constant dense<0xFF800000> : vector<2x8xf32>
    %39 = vector.multi_reduction <maximumf>, %38, %cst_10 [2] : vector<2x8x8xf32> to vector<2x8xf32>
    %40 = vector.shape_cast %39 : vector<2x8xf32> to vector<2x8x1xf32>
    %41 = vector.broadcast %40 : vector<2x8x1xf32> to vector<2x8x8xf32>
    %42 = arith.subf %38, %41 : vector<2x8x8xf32>
    %43 = math.exp %42 : vector<2x8x8xf32>
    %cst_11 = arith.constant dense<0.000000e+00> : vector<2x8xf32>
    %44 = vector.multi_reduction <add>, %43, %cst_11 [2] : vector<2x8x8xf32> to vector<2x8xf32>
    %45 = vector.shape_cast %44 : vector<2x8xf32> to vector<2x8x1xf32>
    %46 = vector.broadcast %45 : vector<2x8x1xf32> to vector<2x8x8xf32>
    %47 = arith.divf %43, %46 : vector<2x8x8xf32>
    %48 = arith.truncf %47 : vector<2x8x8xf32> to vector<2x8x8xbf16>
    %c0_12 = arith.constant 0 : index
    %c0_13 = arith.constant 0 : index
    %c0_14 = arith.constant 0 : index
    %c0_15 = arith.constant 0 : index
    %c0_16 = arith.constant 0 : index
    %49 = vector.load %arg20[%c0_12, %c0_13, %c0_14, %c0_15, %c0_16] : memref<1x1x2x8x8xbf16, #tpu.memory_space<vmem>>, vector<1x1x2x8x8xbf16>
    %50 = vector.shape_cast %49 : vector<1x1x2x8x8xbf16> to vector<2x8x8xbf16>
    %51 = vector.shape_cast %48 : vector<2x8x8xbf16> to vector<1x1x2x8x8xbf16>
    tpu.vector_store %arg20[%c0_12, %c0_13, %c0_14, %c0_15, %c0_16], %51 {strides = array<i32>} : memref<1x1x2x8x8xbf16, #tpu.memory_space<vmem>>, vector<1x1x2x8x8xbf16>,
    %52 = arith.truncf %47 : vector<2x8x8xf32> to vector<2x8x8xbf16>
    "tpu.trace_start"() <{level = 10 : i32, message = "hqk,hkd->hqd"}> : () -> ()
    %cst_17 = arith.constant dense<0.000000e+00> : vector<2x8x16xf32>
    %53 = tpu.matmul %52, %32, %cst_17 {dimension_numbers = #tpu.dot_dimension_numbers<[2], [1], [1], [2], [0, 0, 0, 1, 1, 2], [0], [0]>} : vector<2x8x8xbf16>, vector<2x8x16xbf16>, vector<2x8x16xf32> -> vector<2x8x16xf32>
    "tpu.trace_stop"() : () -> ()
    %54 = vector.extract_strided_slice %53 {offsets = [0, 0, 0], sizes = [1, 8, 16], strides = [1, 1, 1]} : vector<2x8x16xf32> to vector<1x8x16xf32>
    %55 = vector.shape_cast %54 : vector<1x8x16xf32> to vector<8x16xf32>
    %56 = vector.extract_strided_slice %53 {offsets = [1, 0, 0], sizes = [1, 8, 16], strides = [1, 1, 1]} : vector<2x8x16xf32> to vector<1x8x16xf32>
    %57 = vector.shape_cast %56 : vector<1x8x16xf32> to vector<8x16xf32>
    %58 = tpu.concatenate %55, %57 in 1 : vector<8x16xf32>, vector<8x16xf32> -> vector<8x32xf32>
    %59 = arith.truncf %58 : vector<8x32xf32> to vector<8x32xbf16>
    %c0_18 = arith.constant 0 : index
    %c0_19 = arith.constant 0 : index
    %c0_20 = arith.constant 0 : index
    %60 = vector.load %arg8[%c0_18, %c0_19, %c0_20] : memref<1x32x32xbf16, #tpu.memory_space<vmem>>, vector<1x32x32xbf16>
    %61 = vector.shape_cast %60 : vector<1x32x32xbf16> to vector<32x32xbf16>
    %cst_21 = arith.constant dense<0.000000e+00> : vector<8x32xf32>
    %62 = tpu.matmul %59, %61, %cst_21 {dimension_numbers = #tpu.dot_dimension_numbers<[1], [0], [0], [1], [0, 0, 1, 1], [], []>} : vector<8x32xbf16>, vector<32x32xbf16>, vector<8x32xf32> -> vector<8x32xf32>
    %c0_22 = arith.constant 0 : index
    %c0_23 = arith.constant 0 : index
    %c0_24 = arith.constant 0 : index
    %63 = vector.load %arg9[%c0_22, %c0_23, %c0_24] : memref<1x1x32xf32, #tpu.memory_space<vmem>>, vector<1x1x32xf32>
    %64 = vector.shape_cast %63 : vector<1x1x32xf32> to vector<1x32xf32>
    %65 = vector.broadcast %64 : vector<1x32xf32> to vector<8x32xf32>
    %66 = arith.addf %62, %65 : vector<8x32xf32>
    %67 = arith.addf %3, %66 : vector<8x32xf32>
    %c0_25 = arith.constant 0 : index
    %c0_26 = arith.constant 0 : index
    %c0_27 = arith.constant 0 : index
    %68 = vector.load %arg10[%c0_25, %c0_26, %c0_27] : memref<1x1x32xf32, #tpu.memory_space<vmem>>, vector<1x1x32xf32>
    %69 = vector.shape_cast %68 : vector<1x1x32xf32> to vector<1x32xf32>
    %c0_28 = arith.constant 0 : index
    %c0_29 = arith.constant 0 : index
    %c0_30 = arith.constant 0 : index
    %70 = vector.load %arg11[%c0_28, %c0_29, %c0_30] : memref<1x1x32xf32, #tpu.memory_space<vmem>>, vector<1x1x32xf32>
    %71 = vector.shape_cast %70 : vector<1x1x32xf32> to vector<1x32xf32>
    %cst_31 = arith.constant dense<0.000000e+00> : vector<8xf32>
    %72 = vector.multi_reduction <add>, %67, %cst_31 [1] : vector<8x32xf32> to vector<8xf32>
    %73 = vector.shape_cast %72 : vector<8xf32> to vector<8x1xf32>
    %cst_32 = arith.constant 3.200000e+01 : f32
    %74 = vector.broadcast %cst_32 : f32 to vector<8x1xf32>
    %75 = arith.divf %73, %74 : vector<8x1xf32>
    %76 = vector.broadcast %75 : vector<8x1xf32> to vector<8x32xf32>
    %77 = arith.subf %67, %76 : vector<8x32xf32>
    %78 = arith.mulf %77, %77 : vector<8x32xf32>
    %cst_33 = arith.constant dense<0.000000e+00> : vector<8xf32>
    %79 = vector.multi_reduction <add>, %78, %cst_33 [1] : vector<8x32xf32> to vector<8xf32>
    %80 = vector.shape_cast %79 : vector<8xf32> to vector<8x1xf32>
    %cst_34 = arith.constant 3.200000e+01 : f32
    %81 = vector.broadcast %cst_34 : f32 to vector<8x1xf32>
    %82 = arith.divf %80, %81 : vector<8x1xf32>
    %cst_35 = arith.constant 9.99999996E-13 : f32
    %83 = vector.broadcast %cst_35 : f32 to vector<8x1xf32>
    %84 = arith.addf %82, %83 : vector<8x1xf32>
    %85 = math.rsqrt %84 : vector<8x1xf32>
    %86 = vector.broadcast %85 : vector<8x1xf32> to vector<8x32xf32>
    %87 = arith.mulf %77, %86 : vector<8x32xf32>
    %88 = vector.broadcast %69 : vector<1x32xf32> to vector<8x32xf32>
    %89 = arith.mulf %87, %88 : vector<8x32xf32>
    %90 = vector.broadcast %71 : vector<1x32xf32> to vector<8x32xf32>
    %91 = arith.addf %89, %90 : vector<8x32xf32>
    %92 = arith.truncf %91 : vector<8x32xf32> to vector<8x32xbf16>
    %c0_36 = arith.constant 0 : index
    %c0_37 = arith.constant 0 : index
    %c0_38 = arith.constant 0 : index
    %93 = vector.load %arg12[%c0_36, %c0_37, %c0_38] : memref<1x32x64xbf16, #tpu.memory_space<vmem>>, vector<1x32x64xbf16>
    %94 = vector.shape_cast %93 : vector<1x32x64xbf16> to vector<32x64xbf16>
    %cst_39 = arith.constant dense<0.000000e+00> : vector<8x64xf32>
    %95 = tpu.matmul %92, %94, %cst_39 {dimension_numbers = #tpu.dot_dimension_numbers<[1], [0], [0], [1], [0, 0, 1, 1], [], []>} : vector<8x32xbf16>, vector<32x64xbf16>, vector<8x64xf32> -> vector<8x64xf32>
    %c0_40 = arith.constant 0 : index
    %c0_41 = arith.constant 0 : index
    %c0_42 = arith.constant 0 : index
    %96 = vector.load %arg13[%c0_40, %c0_41, %c0_42] : memref<1x1x64xf32, #tpu.memory_space<vmem>>, vector<1x1x64xf32>
    %97 = vector.shape_cast %96 : vector<1x1x64xf32> to vector<1x64xf32>
    %98 = vector.broadcast %97 : vector<1x64xf32> to vector<8x64xf32>
    %99 = arith.addf %95, %98 : vector<8x64xf32>
    %100 = arith.mulf %99, %99 : vector<8x64xf32>
    %101 = arith.mulf %99, %100 : vector<8x64xf32>
    %cst_43 = arith.constant 4.471500e-02 : f32
    %102 = vector.broadcast %cst_43 : f32 to vector<8x64xf32>
    %103 = arith.mulf %102, %101 : vector<8x64xf32>
    %104 = arith.addf %99, %103 : vector<8x64xf32>
    %cst_44 = arith.constant 0.797884583 : f32
    %105 = vector.broadcast %cst_44 : f32 to vector<8x64xf32>
    %106 = arith.mulf %105, %104 : vector<8x64xf32>
    %107 = math.tanh %106 : vector<8x64xf32>
    %cst_45 = arith.constant 1.000000e+00 : f32
    %108 = vector.broadcast %cst_45 : f32 to vector<8x64xf32>
    %109 = arith.addf %108, %107 : vector<8x64xf32>
    %cst_46 = arith.constant 5.000000e-01 : f32
    %110 = vector.broadcast %cst_46 : f32 to vector<8x64xf32>
    %111 = arith.mulf %110, %109 : vector<8x64xf32>
    %112 = arith.mulf %99, %111 : vector<8x64xf32>
    %113 = arith.truncf %112 : vector<8x64xf32> to vector<8x64xbf16>
    %c0_47 = arith.constant 0 : index
    %c0_48 = arith.constant 0 : index
    %c0_49 = arith.constant 0 : index
    %114 = vector.load %arg14[%c0_47, %c0_48, %c0_49] : memref<1x64x32xbf16, #tpu.memory_space<vmem>>, vector<1x64x32xbf16>
    %115 = vector.shape_cast %114 : vector<1x64x32xbf16> to vector<64x32xbf16>
    %cst_50 = arith.constant dense<0.000000e+00> : vector<8x32xf32>
    %116 = tpu.matmul %113, %115, %cst_50 {dimension_numbers = #tpu.dot_dimension_numbers<[1], [0], [0], [1], [0, 0, 1, 1], [], []>} : vector<8x64xbf16>, vector<64x32xbf16>, vector<8x32xf32> -> vector<8x32xf32>
    %c0_51 = arith.constant 0 : index
    %c0_52 = arith.constant 0 : index
    %c0_53 = arith.constant 0 : index
    %117 = vector.load %arg15[%c0_51, %c0_52, %c0_53] : memref<1x1x32xf32, #tpu.memory_space<vmem>>, vector<1x1x32xf32>
    %118 = vector.shape_cast %117 : vector<1x1x32xf32> to vector<1x32xf32>
    %119 = vector.broadcast %118 : vector<1x32xf32> to vector<8x32xf32>
    %120 = arith.addf %116, %119 : vector<8x32xf32>
    %121 = arith.addf %91, %120 : vector<8x32xf32>
    %c0_54 = arith.constant 0 : index
    %c0_55 = arith.constant 0 : index
    %c0_56 = arith.constant 0 : index
    %122 = vector.load %arg16[%c0_54, %c0_55, %c0_56] : memref<1x1x32xf32, #tpu.memory_space<vmem>>, vector<1x1x32xf32>
    %123 = vector.shape_cast %122 : vector<1x1x32xf32> to vector<1x32xf32>
    %c0_57 = arith.constant 0 : index
    %c0_58 = arith.constant 0 : index
    %c0_59 = arith.constant 0 : index
    %124 = vector.load %arg17[%c0_57, %c0_58, %c0_59] : memref<1x1x32xf32, #tpu.memory_space<vmem>>, vector<1x1x32xf32>
    %125 = vector.shape_cast %124 : vector<1x1x32xf32> to vector<1x32xf32>
    %cst_60 = arith.constant dense<0.000000e+00> : vector<8xf32>
    %126 = vector.multi_reduction <add>, %121, %cst_60 [1] : vector<8x32xf32> to vector<8xf32>
    %127 = vector.shape_cast %126 : vector<8xf32> to vector<8x1xf32>
    %cst_61 = arith.constant 3.200000e+01 : f32
    %128 = vector.broadcast %cst_61 : f32 to vector<8x1xf32>
    %129 = arith.divf %127, %128 : vector<8x1xf32>
    %130 = vector.broadcast %129 : vector<8x1xf32> to vector<8x32xf32>
    %131 = arith.subf %121, %130 : vector<8x32xf32>
    %132 = arith.mulf %131, %131 : vector<8x32xf32>
    %cst_62 = arith.constant dense<0.000000e+00> : vector<8xf32>
    %133 = vector.multi_reduction <add>, %132, %cst_62 [1] : vector<8x32xf32> to vector<8xf32>
    %134 = vector.shape_cast %133 : vector<8xf32> to vector<8x1xf32>
    %cst_63 = arith.constant 3.200000e+01 : f32
    %135 = vector.broadcast %cst_63 : f32 to vector<8x1xf32>
    %136 = arith.divf %134, %135 : vector<8x1xf32>
    %cst_64 = arith.constant 9.99999996E-13 : f32
    %137 = vector.broadcast %cst_64 : f32 to vector<8x1xf32>
    %138 = arith.addf %136, %137 : vector<8x1xf32>
    %139 = math.rsqrt %138 : vector<8x1xf32>
    %140 = vector.broadcast %139 : vector<8x1xf32> to vector<8x32xf32>
    %141 = arith.mulf %131, %140 : vector<8x32xf32>
    %142 = vector.broadcast %123 : vector<1x32xf32> to vector<8x32xf32>
    %143 = arith.mulf %141, %142 : vector<8x32xf32>
    %144 = vector.broadcast %125 : vector<1x32xf32> to vector<8x32xf32>
    %145 = arith.addf %143, %144 : vector<8x32xf32>
    %c0_65 = arith.constant 0 : index
    %c0_66 = arith.constant 0 : index
    %146 = vector.load %arg21[%c0_65, %c0_66] : memref<8x32xf32, #tpu.memory_space<vmem>>, vector<8x32xf32>
    tpu.vector_store %arg21[%c0_65, %c0_66], %145 {strides = array<i32>} : memref<8x32xf32, #tpu.memory_space<vmem>>, vector<8x32xf32>,
    %147 = arith.truncf %145 : vector<8x32xf32> to vector<8x32xbf16>
    %c0_67 = arith.constant 0 : index
    %c0_68 = arith.constant 0 : index
    %c0_69 = arith.constant 0 : index
    %148 = vector.load %arg18[%c0_67, %c0_68, %c0_69] : memref<1x8x32xbf16, #tpu.memory_space<vmem>>, vector<1x8x32xbf16>
    %149 = vector.shape_cast %148 : vector<1x8x32xbf16> to vector<8x32xbf16>
    %150 = vector.shape_cast %147 : vector<8x32xbf16> to vector<1x8x32xbf16>
    tpu.vector_store %arg18[%c0_67, %c0_68, %c0_69], %150 {strides = array<i32>} : memref<1x8x32xbf16, #tpu.memory_space<vmem>>, vector<1x8x32xbf16>,
    return
  }
  func.func @transform_0(%arg0: i32, %arg1: i32) -> (i32, i32) {
    %c0_i32 = arith.constant 0 : i32
    %c0_i32_0 = arith.constant 0 : i32
    return %arg0, %c0_i32 : i32, i32
  }
  func.func @transform_1(%arg0: i32, %arg1: i32) -> (i32, i32) {
    %c0_i32 = arith.constant 0 : i32
    %c0_i32_0 = arith.constant 0 : i32
    %c0_i32_1 = arith.constant 0 : i32
    return %c0_i32, %c0_i32_0 : i32, i32
  }
  func.func @transform_2(%arg0: i32, %arg1: i32) -> (i32, i32) {
    %c0_i32 = arith.constant 0 : i32
    %c0_i32_0 = arith.constant 0 : i32
    %c0_i32_1 = arith.constant 0 : i32
    return %c0_i32, %c0_i32_0 : i32, i32
  }
  func.func @transform_3(%arg0: i32, %arg1: i32) -> (i32, i32) {
    %c0_i32 = arith.constant 0 : i32
    %c0_i32_0 = arith.constant 0 : i32
    %c0_i32_1 = arith.constant 0 : i32
    return %c0_i32, %c0_i32_0 : i32, i32
  }
  func.func @transform_4(%arg0: i32, %arg1: i32) -> (i32, i32, i32) {
    %c0_i32 = arith.constant 0 : i32
    %c0_i32_0 = arith.constant 0 : i32
    %c0_i32_1 = arith.constant 0 : i32
    return %arg1, %c0_i32, %c0_i32_0 : i32, i32, i32
  }
  func.func @transform_5(%arg0: i32, %arg1: i32) -> (i32, i32, i32) {
    %c0_i32 = arith.constant 0 : i32
    %c0_i32_0 = arith.constant 0 : i32
    %c0_i32_1 = arith.constant 0 : i32
    return %arg1, %c0_i32, %c0_i32_0 : i32, i32, i32
  }
  func.func @transform_6(%arg0: i32, %arg1: i32) -> (i32, i32, i32) {
    %c0_i32 = arith.constant 0 : i32
    %c0_i32_0 = arith.constant 0 : i32
    %c0_i32_1 = arith.constant 0 : i32
    return %arg1, %c0_i32, %c0_i32_0 : i32, i32, i32
  }
  func.func @transform_7(%arg0: i32, %arg1: i32) -> (i32, i32, i32) {
    %c0_i32 = arith.constant 0 : i32
    %c0_i32_0 = arith.constant 0 : i32
    %c0_i32_1 = arith.constant 0 : i32
    return %arg1, %c0_i32, %c0_i32_0 : i32, i32, i32
  }
  func.func @transform_8(%arg0: i32, %arg1: i32) -> (i32, i32, i32) {
    %c0_i32 = arith.constant 0 : i32
    %c0_i32_0 = arith.constant 0 : i32
    %c0_i32_1 = arith.constant 0 : i32
    return %arg1, %c0_i32, %c0_i32_0 : i32, i32, i32
  }
  func.func @transform_9(%arg0: i32, %arg1: i32) -> (i32, i32, i32) {
    %c0_i32 = arith.constant 0 : i32
    %c0_i32_0 = arith.constant 0 : i32
    %c0_i32_1 = arith.constant 0 : i32
    return %arg1, %c0_i32, %c0_i32_0 : i32, i32, i32
  }
  func.func @transform_10(%arg0: i32, %arg1: i32) -> (i32, i32, i32) {
    %c0_i32 = arith.constant 0 : i32
    %c0_i32_0 = arith.constant 0 : i32
    %c0_i32_1 = arith.constant 0 : i32
    return %arg1, %c0_i32, %c0_i32_0 : i32, i32, i32
  }
  func.func @transform_11(%arg0: i32, %arg1: i32) -> (i32, i32, i32) {
    %c0_i32 = arith.constant 0 : i32
    %c0_i32_0 = arith.constant 0 : i32
    %c0_i32_1 = arith.constant 0 : i32
    return %arg1, %c0_i32, %c0_i32_0 : i32, i32, i32
  }
  func.func @transform_12(%arg0: i32, %arg1: i32) -> (i32, i32, i32) {
    %c0_i32 = arith.constant 0 : i32
    %c0_i32_0 = arith.constant 0 : i32
    %c0_i32_1 = arith.constant 0 : i32
    return %arg1, %c0_i32, %c0_i32_0 : i32, i32, i32
  }
  func.func @transform_13(%arg0: i32, %arg1: i32) -> (i32, i32, i32) {
    %c0_i32 = arith.constant 0 : i32
    %c0_i32_0 = arith.constant 0 : i32
    %c0_i32_1 = arith.constant 0 : i32
    return %arg1, %c0_i32, %c0_i32_0 : i32, i32, i32
  }
  func.func @transform_14(%arg0: i32, %arg1: i32) -> (i32, i32, i32) {
    %c0_i32 = arith.constant 0 : i32
    %c0_i32_0 = arith.constant 0 : i32
    %c0_i32_1 = arith.constant 0 : i32
    return %arg1, %c0_i32, %c0_i32_0 : i32, i32, i32
  }
  func.func @transform_15(%arg0: i32, %arg1: i32) -> (i32, i32, i32) {
    %c0_i32 = arith.constant 0 : i32
    %c0_i32_0 = arith.constant 0 : i32
    %c0_i32_1 = arith.constant 0 : i32
    return %arg1, %c0_i32, %c0_i32_0 : i32, i32, i32
  }
  func.func @transform_16(%arg0: i32, %arg1: i32) -> (i32, i32, i32) {
    %c0_i32 = arith.constant 0 : i32
    %c0_i32_0 = arith.constant 0 : i32
    return %arg1, %arg0, %c0_i32 : i32, i32, i32
  }
  func.func @transform_17(%arg0: i32, %arg1: i32) -> (i32, i32) {
    %c0_i32 = arith.constant 0 : i32
    %c0_i32_0 = arith.constant 0 : i32
    return %arg0, %c0_i32 : i32, i32
  }
  func.func @transform_18(%arg0: i32, %arg1: i32) -> (i32, i32, i32, i32, i32) {
    %c0_i32 = arith.constant 0 : i32
    %c0_i32_0 = arith.constant 0 : i32
    %c0_i32_1 = arith.constant 0 : i32
    %c0_i32_2 = arith.constant 0 : i32
    return %arg1, %arg0, %c0_i32, %c0_i32_0, %c0_i32_1 : i32, i32, i32, i32, i32
  }
}

</mosaic_0001>

<llo_original>
// kernel: tpu_custom_call.1
$region0: #{tpu_custom_call.1}
  #allocation0 [shape = 'u32[]', space=smem, size = 0x4, offset = 0x4, fixed_abs, tag = 'smem constant byte address 0x4 - core index']
  #allocation1 [shape = 'u32[72,128]{1,0:T(1,128)}', space=vmem, size = 0x9000, scoped, tag = 'internal scratch']
  #allocation2 [shape = 'f32[8,32]{1,0:T(8,128)}', space=vmem, size = 0x1000, scoped, tag = 'scratch operand']
  %s0 = inlined_call_operand.hbm [shape: f32[16,32], index: 0, kind: input, shape index: {}]
  %s1 = inlined_call_operand.hbm [shape: f32[2,8], index: 1, kind: input, shape index: {}]
  %s2 = inlined_call_operand.vmem [shape: f32[1,32], index: 2, kind: input, shape index: {}]
  %s3 = inlined_call_operand.hbm [shape: f32[1,32], index: 3, kind: input, shape index: {}]
  %s4 = inlined_call_operand.vmem [shape: bf16[2,32,96], index: 4, kind: input, shape index: {}]
  %s5 = inlined_call_operand.vmem [shape: f32[2,1,96], index: 5, kind: input, shape index: {}]
  %s6 = inlined_call_operand.vmem [shape: bf16[2,32,32], index: 6, kind: input, shape index: {}]
  %s7 = inlined_call_operand.vmem [shape: f32[2,1,32], index: 7, kind: input, shape index: {}]
  %s8 = inlined_call_operand.vmem [shape: f32[2,1,32], index: 8, kind: input, shape index: {}]
  %s9 = inlined_call_operand.hbm [shape: f32[2,1,32], index: 9, kind: input, shape index: {}]
  %s10 = inlined_call_operand.vmem [shape: bf16[2,32,64], index: 10, kind: input, shape index: {}]
  %s11 = inlined_call_operand.vmem [shape: f32[2,1,64], index: 11, kind: input, shape index: {}]
  %s12 = inlined_call_operand.vmem [shape: bf16[2,64,32], index: 12, kind: input, shape index: {}]
  %s13 = inlined_call_operand.vmem [shape: f32[2,1,32], index: 13, kind: input, shape index: {}]
  %s14 = inlined_call_operand.vmem [shape: f32[2,1,32], index: 14, kind: input, shape index: {}]
  %s15 = inlined_call_operand.hbm [shape: f32[2,1,32], index: 15, kind: input, shape index: {}]
  %s16 = inlined_call_operand.hbm [shape: bf16[2,16,32], index: 16, kind: output, shape index: {0}]
  %s17 = inlined_call_operand.hbm [shape: f32[16,32], index: 17, kind: output, shape index: {1}]
  %s18 = inlined_call_operand.hbm [shape: bf16[2,2,2,8,8], index: 18, kind: output, shape index: {2}]
  %19 = xla_tuple %s16, %s17, %s18
  %s20 = sld [smem:[#allocation0]]
  $region137: #{tpu_custom_call.1} parent=0
    _
  %s22 = ssub.s32 1, %s20
  %s23 = scalar_select 0, %s22, %s20
  $region1: #{tpu_custom_call.1} parent=0
    #allocation3 [shape = 'u8[8192]{0}', space=vmem, size = 0x2000, scoped, tag = 'input window, operand 0']
    #allocation4 [shape = 's32[2]{0}', space=sflag, size = 0x8, scoped, tag = 'scoped memory for tpu_custom_call.1']
    #allocation5 [shape = 's32[2]{0}', space=sflag, size = 0x8, scoped, tag = 'scoped memory for tpu_custom_call.1']
    #allocation6 [shape = 'u8[1024]{0}', space=vmem, size = 0x400, scoped, tag = 'input window, operand 1, single buffered']
    #allocation7 [shape = 's32[1]{0}', space=sflag, size = 0x4, scoped, tag = 'scoped memory for tpu_custom_call.1']
    #allocation8 [shape = 'u8[512]{0}', space=vmem, size = 0x400, scoped, tag = 'input window, operand 3, single buffered']
    #allocation9 [shape = 'u8[1024]{0}', space=vmem, size = 0x400, scoped, tag = 'input window, operand 9']
    #allocation10 [shape = 's32[2]{0}', space=sflag, size = 0x8, scoped, tag = 'scoped memory for tpu_custom_call.1']
    #allocation11 [shape = 'u8[1024]{0}', space=vmem, size = 0x400, scoped, tag = 'input window, operand 15']
    #allocation12 [shape = 'u8[4096]{0}', space=vmem, size = 0x1000, scoped, tag = 'output window, operand 0']
    #allocation13 [shape = 'u8[8192]{0}', space=vmem, size = 0x2000, scoped, tag = 'output window, operand 1']
    #allocation14 [shape = 's32[2]{0}', space=sflag, size = 0x8, scoped, tag = 'scoped memory for tpu_custom_call.1']
    #allocation15 [shape = 'u8[8192]{0}', space=vmem, size = 0x2000, scoped, tag = 'output window, operand 2']
    %24 = vsyncpa [#allocation4], 0
    %s25 = scalar_lea.sflag [#allocation4], 1
    %26 = vsyncpa %s25, 0
    %27 = vsyncpa [#allocation7], 0
    %28 = vsyncpa [#allocation10], 0
    %s29 = scalar_lea.sflag [#allocation10], 1
    %30 = vsyncpa %s29, 0
    %31 = vsyncpa [#allocation5], 0
    %s32 = scalar_lea.sflag [#allocation5], 1
    %33 = vsyncpa %s32, 0
    %34 = vsyncpa [#allocation14], 0
    %s35 = scalar_lea.sflag [#allocation14], 1
    %36 = vsyncpa %s35, 0
    loop: start=0, step=1, limit=6
    $region2: #{tpu_custom_call.1} parent=1 // loop_pre_header
      _
    $region3: #{tpu_custom_call.1} parent=1 // loop_header
      %s38 = sphi 0, %s42
      %p39 = scmp.ge.s32.totalorder %s38, 6
      %s45 = sphi 0, %s57
      %s46 = sphi 0, %s53
      %s47 = sphi 0, %s45
      %s48 = sphi 0, %s46
      %s49 = sphi 0, %s47
      %s50 = sphi 0, %s48
      %s60 = sphi 0, %s62
      %s63 = sphi 0, %s60
      %s64 = sphi 0, %s63
      %s80 = sphi 0, %s64
      %s84 = sphi 0, %s84
      %s86 = sphi 0, %s84
      %s87 = sphi 0, %s86
      %s101 = sphi 0, %s87
      %s105 = sphi 0, %s105
      %s107 = sphi 0, %s105
      %s108 = sphi 0, %s107
      %s122 = sphi 0, %s108
      %s126 = sphi 0, %s126
      %s128 = sphi 0, %s126
      %s129 = sphi 0, %s128
      %s143 = sphi 0, %s129
      %s149 = sphi 0, %s151
      %s152 = sphi 0, %s149
      %s153 = sphi 0, %s152
      %s169 = sphi 0, %s153
      %s175 = sphi 0, %s177
      %s178 = sphi 0, %s175
      %s179 = sphi 0, %s178
      %s195 = sphi 0, %s179
      %s201 = sphi 0, %s203
      %s204 = sphi 0, %s201
      %s205 = sphi 0, %s204
      %s221 = sphi 0, %s205
      %s227 = sphi 0, %s229
      %s230 = sphi 0, %s227
      %s231 = sphi 0, %s230
      %s247 = sphi 0, %s231
      %s253 = sphi 0, %s255
      %s256 = sphi 0, %s253
      %s257 = sphi 0, %s256
      %s273 = sphi 0, %s257
      %s279 = sphi 0, %s281
      %s282 = sphi 0, %s279
      %s283 = sphi 0, %s282
      %s299 = sphi 0, %s283
      %s305 = sphi 0, %s307
      %s308 = sphi 0, %s305
      %s309 = sphi 0, %s308
      %s325 = sphi 0, %s309
      %s331 = sphi 0, %s333
      %s334 = sphi 0, %s331
      %s335 = sphi 0, %s334
      %s351 = sphi 0, %s335
      %s357 = sphi 0, %s359
      %s360 = sphi 0, %s357
      %s361 = sphi 0, %s360
      %s377 = sphi 0, %s361
      %s383 = sphi 0, %s385
      %s386 = sphi 0, %s383
      %s387 = sphi 0, %s386
      %s403 = sphi 0, %s387
      %s409 = sphi 0, %s411
      %s412 = sphi 0, %s409
      %s413 = sphi 0, %s412
      %s429 = sphi 0, %s413
      %s435 = sphi 0, %s437
      %s438 = sphi 0, %s435
      %s439 = sphi 0, %s438
      %s455 = sphi 0, %s439
      %s463 = sphi 0, %s465
      %s466 = sphi 0, %s463
      %s467 = sphi 0, %s466
      %s483 = sphi 0, %s467
      %s489 = sphi 0, %s491
      %s492 = sphi 0, %s489
      %s493 = sphi 0, %s492
      %s509 = sphi 0, %s493
      %s517 = sphi 0, %s519
      %s520 = sphi 0, %s517
      %s521 = sphi 0, %s520
      %s537 = sphi 0, %s521
    $region4: #{tpu_custom_call.1} parent=1 // loop_header_branch
      %41 = sbr.rel (%p39) target = $region8
    $region5: #{tpu_custom_call.1} parent=1 // loop_body
      %s43 = ssub.s32 %s38, 1
      %s44 = ssub.s32 %s38, 2
      %s51 = sadd.s32 1, %s46
      %p52 = scmp.ge.s32.totalorder %s51, 2
      %s53 = scalar_select %p52, 0, %s51
      %s54 = sadd.s32 1, %s45
      %s55 = scalar_select %p52, %s54, %s45
      %p56 = scmp.ge.s32.totalorder %s55, 2
      %s57 = scalar_select %p56, 0, %s55
      %s58 = ssub.s32 %s45, %s57
      %p59 = scmp.eq.s32.totalorder %s58, 0
      %s61 = sadd.s32 %s60, 1
      %s62 = scalar_select %p59, %s60, %s61
      %p65 = pneg %p59
      %p66 = scmp.eq.s32.totalorder %s38, 3
      %p67 = por %p65, %p66
      %p68 = scmp.ne.s32.totalorder %s60, %s63
      %p69 = scmp.eq.s32.totalorder %s38, 0
      %p70 = por %p68, %p69
      %p71 = scmp.ne.s32.totalorder %s60, %s63
      %p72 = scmp.eq.s32.totalorder %s43, 3
      %p73 = por %p71, %p72
      %p74 = scmp.ne.s32.totalorder %s63, %s64
      %p75 = scmp.eq.s32.totalorder %s43, 0
      %p76 = por %p74, %p75
      %p77 = scmp.ne.s32.totalorder %s63, %s64
      %p78 = scmp.eq.s32.totalorder %s44, 3
      %p79 = por %p77, %p78
      %p81 = scmp.ne.s32.totalorder %s64, %s80
      %p82 = scmp.eq.s32.totalorder %s44, 0
      %p83 = por %p81, %p82
      %s85 = sadd.s32 %s84, 1
      %p88 = scmp.eq.s32.totalorder %s38, 3
      %p89 = scmp.ne.s32.totalorder %s84, %s86
      %p90 = scmp.eq.s32.totalorder %s38, 0
      %p91 = por %p89, %p90
      %p92 = scmp.ne.s32.totalorder %s84, %s86
      %p93 = scmp.eq.s32.totalorder %s43, 3
      %p94 = por %p92, %p93
      %p95 = scmp.ne.s32.totalorder %s86, %s87
      %p96 = scmp.eq.s32.totalorder %s43, 0
      %p97 = por %p95, %p96
      %p98 = scmp.ne.s32.totalorder %s86, %s87
      %p99 = scmp.eq.s32.totalorder %s44, 3
      %p100 = por %p98, %p99
      %p102 = scmp.ne.s32.totalorder %s87, %s101
      %p103 = scmp.eq.s32.totalorder %s44, 0
      %p104 = por %p102, %p103
      %s106 = sadd.s32 %s105, 1
      %p109 = scmp.eq.s32.totalorder %s38, 3
      %p110 = scmp.ne.s32.totalorder %s105, %s107
      %p111 = scmp.eq.s32.totalorder %s38, 0
      %p112 = por %p110, %p111
      %p113 = scmp.ne.s32.totalorder %s105, %s107
      %p114 = scmp.eq.s32.totalorder %s43, 3
      %p115 = por %p113, %p114
      %p116 = scmp.ne.s32.totalorder %s107, %s108
      %p117 = scmp.eq.s32.totalorder %s43, 0
      %p118 = por %p116, %p117
      %p119 = scmp.ne.s32.totalorder %s107, %s108
      %p120 = scmp.eq.s32.totalorder %s44, 3
      %p121 = por %p119, %p120
      %p123 = scmp.ne.s32.totalorder %s108, %s122
      %p124 = scmp.eq.s32.totalorder %s44, 0
      %p125 = por %p123, %p124
      %s127 = sadd.s32 %s126, 1
      %p130 = scmp.eq.s32.totalorder %s38, 3
      %p131 = scmp.ne.s32.totalorder %s126, %s128
      %p132 = scmp.eq.s32.totalorder %s38, 0
      %p133 = por %p131, %p132
      %p134 = scmp.ne.s32.totalorder %s126, %s128
      %p135 = scmp.eq.s32.totalorder %s43, 3
      %p136 = por %p134, %p135
      %p137 = scmp.ne.s32.totalorder %s128, %s129
      %p138 = scmp.eq.s32.totalorder %s43, 0
      %p139 = por %p137, %p138
      %p140 = scmp.ne.s32.totalorder %s128, %s129
      %p141 = scmp.eq.s32.totalorder %s44, 3
      %p142 = por %p140, %p141
      %p144 = scmp.ne.s32.totalorder %s129, %s143
      %p145 = scmp.eq.s32.totalorder %s44, 0
      %p146 = por %p144, %p145
      %s147 = ssub.s32 %s46, %s53
      %p148 = scmp.eq.s32.totalorder %s147, 0
      %s150 = sadd.s32 %s149, 1
      %s151 = scalar_select %p148, %s149, %s150
      %p154 = pneg %p148
      %p155 = scmp.eq.s32.totalorder %s38, 3
      %p156 = por %p154, %p155
      %p157 = scmp.ne.s32.totalorder %s149, %s152
      %p158 = scmp.eq.s32.totalorder %s38, 0
      %p159 = por %p157, %p158
      %p160 = scmp.ne.s32.totalorder %s149, %s152
      %p161 = scmp.eq.s32.totalorder %s43, 3
      %p162 = por %p160, %p161
      %p163 = scmp.ne.s32.totalorder %s152, %s153
      %p164 = scmp.eq.s32.totalorder %s43, 0
      %p165 = por %p163, %p164
      %p166 = scmp.ne.s32.totalorder %s152, %s153
      %p167 = scmp.eq.s32.totalorder %s44, 3
      %p168 = por %p166, %p167
      %p170 = scmp.ne.s32.totalorder %s153, %s169
      %p171 = scmp.eq.s32.totalorder %s44, 0
      %p172 = por %p170, %p171
      %s173 = ssub.s32 %s46, %s53
      %p174 = scmp.eq.s32.totalorder %s173, 0
      %s176 = sadd.s32 %s175, 1
      %s177 = scalar_select %p174, %s175, %s176
      %p180 = pneg %p174
      %p181 = scmp.eq.s32.totalorder %s38, 3
      %p182 = por %p180, %p181
      %p183 = scmp.ne.s32.totalorder %s175, %s178
      %p184 = scmp.eq.s32.totalorder %s38, 0
      %p185 = por %p183, %p184
      %p186 = scmp.ne.s32.totalorder %s175, %s178
      %p187 = scmp.eq.s32.totalorder %s43, 3
      %p188 = por %p186, %p187
      %p189 = scmp.ne.s32.totalorder %s178, %s179
      %p190 = scmp.eq.s32.totalorder %s43, 0
      %p191 = por %p189, %p190
      %p192 = scmp.ne.s32.totalorder %s178, %s179
      %p193 = scmp.eq.s32.totalorder %s44, 3
      %p194 = por %p192, %p193
      %p196 = scmp.ne.s32.totalorder %s179, %s195
      %p197 = scmp.eq.s32.totalorder %s44, 0
      %p198 = por %p196, %p197
      %s199 = ssub.s32 %s46, %s53
      %p200 = scmp.eq.s32.totalorder %s199, 0
      %s202 = sadd.s32 %s201, 1
      %s203 = scalar_select %p200, %s201, %s202
      %p206 = pneg %p200
      %p207 = scmp.eq.s32.totalorder %s38, 3
      %p208 = por %p206, %p207
      %p209 = scmp.ne.s32.totalorder %s201, %s204
      %p210 = scmp.eq.s32.totalorder %s38, 0
      %p211 = por %p209, %p210
      %p212 = scmp.ne.s32.totalorder %s201, %s204
      %p213 = scmp.eq.s32.totalorder %s43, 3
      %p214 = por %p212, %p213
      %p215 = scmp.ne.s32.totalorder %s204, %s205
      %p216 = scmp.eq.s32.totalorder %s43, 0
      %p217 = por %p215, %p216
      %p218 = scmp.ne.s32.totalorder %s204, %s205
      %p219 = scmp.eq.s32.totalorder %s44, 3
      %p220 = por %p218, %p219
      %p222 = scmp.ne.s32.totalorder %s205, %s221
      %p223 = scmp.eq.s32.totalorder %s44, 0
      %p224 = por %p222, %p223
      %s225 = ssub.s32 %s46, %s53
      %p226 = scmp.eq.s32.totalorder %s225, 0
      %s228 = sadd.s32 %s227, 1
      %s229 = scalar_select %p226, %s227, %s228
      %p232 = pneg %p226
      %p233 = scmp.eq.s32.totalorder %s38, 3
      %p234 = por %p232, %p233
      %p235 = scmp.ne.s32.totalorder %s227, %s230
      %p236 = scmp.eq.s32.totalorder %s38, 0
      %p237 = por %p235, %p236
      %p238 = scmp.ne.s32.totalorder %s227, %s230
      %p239 = scmp.eq.s32.totalorder %s43, 3
      %p240 = por %p238, %p239
      %p241 = scmp.ne.s32.totalorder %s230, %s231
      %p242 = scmp.eq.s32.totalorder %s43, 0
      %p243 = por %p241, %p242
      %p244 = scmp.ne.s32.totalorder %s230, %s231
      %p245 = scmp.eq.s32.totalorder %s44, 3
      %p246 = por %p244, %p245
      %p248 = scmp.ne.s32.totalorder %s231, %s247
      %p249 = scmp.eq.s32.totalorder %s44, 0
      %p250 = por %p248, %p249
      %s251 = ssub.s32 %s46, %s53
      %p252 = scmp.eq.s32.totalorder %s251, 0
      %s254 = sadd.s32 %s253, 1
      %s255 = scalar_select %p252, %s253, %s254
      %p258 = pneg %p252
      %p259 = scmp.eq.s32.totalorder %s38, 3
      %p260 = por %p258, %p259
      %p261 = scmp.ne.s32.totalorder %s253, %s256
      %p262 = scmp.eq.s32.totalorder %s38, 0
      %p263 = por %p261, %p262
      %p264 = scmp.ne.s32.totalorder %s253, %s256
      %p265 = scmp.eq.s32.totalorder %s43, 3
      %p266 = por %p264, %p265
      %p267 = scmp.ne.s32.totalorder %s256, %s257
      %p268 = scmp.eq.s32.totalorder %s43, 0
      %p269 = por %p267, %p268
      %p270 = scmp.ne.s32.totalorder %s256, %s257
      %p271 = scmp.eq.s32.totalorder %s44, 3
      %p272 = por %p270, %p271
      %p274 = scmp.ne.s32.totalorder %s257, %s273
      %p275 = scmp.eq.s32.totalorder %s44, 0
      %p276 = por %p274, %p275
      %s277 = ssub.s32 %s46, %s53
      %p278 = scmp.eq.s32.totalorder %s277, 0
      %s280 = sadd.s32 %s279, 1
      %s281 = scalar_select %p278, %s279, %s280
      %p284 = pneg %p278
      %p285 = scmp.eq.s32.totalorder %s38, 3
      %p286 = por %p284, %p285
      %p287 = scmp.ne.s32.totalorder %s279, %s282
      %p288 = scmp.eq.s32.totalorder %s38, 0
      %p289 = por %p287, %p288
      %p290 = scmp.ne.s32.totalorder %s279, %s282
      %p291 = scmp.eq.s32.totalorder %s43, 3
      %p292 = por %p290, %p291
      %p293 = scmp.ne.s32.totalorder %s282, %s283
      %p294 = scmp.eq.s32.totalorder %s43, 0
      %p295 = por %p293, %p294
      %p296 = scmp.ne.s32.totalorder %s282, %s283
      %p297 = scmp.eq.s32.totalorder %s44, 3
      %p298 = por %p296, %p297
      %p300 = scmp.ne.s32.totalorder %s283, %s299
      %p301 = scmp.eq.s32.totalorder %s44, 0
      %p302 = por %p300, %p301
      %s303 = ssub.s32 %s46, %s53
      %p304 = scmp.eq.s32.totalorder %s303, 0
      %s306 = sadd.s32 %s305, 1
      %s307 = scalar_select %p304, %s305, %s306
      %p310 = pneg %p304
      %p311 = scmp.eq.s32.totalorder %s38, 3
      %p312 = por %p310, %p311
      %p313 = scmp.ne.s32.totalorder %s305, %s308
      %p314 = scmp.eq.s32.totalorder %s38, 0
      %p315 = por %p313, %p314
      %p316 = scmp.ne.s32.totalorder %s305, %s308
      %p317 = scmp.eq.s32.totalorder %s43, 3
      %p318 = por %p316, %p317
      %p319 = scmp.ne.s32.totalorder %s308, %s309
      %p320 = scmp.eq.s32.totalorder %s43, 0
      %p321 = por %p319, %p320
      %p322 = scmp.ne.s32.totalorder %s308, %s309
      %p323 = scmp.eq.s32.totalorder %s44, 3
      %p324 = por %p322, %p323
      %p326 = scmp.ne.s32.totalorder %s309, %s325
      %p327 = scmp.eq.s32.totalorder %s44, 0
      %p328 = por %p326, %p327
      %s329 = ssub.s32 %s46, %s53
      %p330 = scmp.eq.s32.totalorder %s329, 0
      %s332 = sadd.s32 %s331, 1
      %s333 = scalar_select %p330, %s331, %s332
      %p336 = pneg %p330
      %p337 = scmp.eq.s32.totalorder %s38, 3
      %p338 = por %p336, %p337
      %p339 = scmp.ne.s32.totalorder %s331, %s334
      %p340 = scmp.eq.s32.totalorder %s38, 0
      %p341 = por %p339, %p340
      %p342 = scmp.ne.s32.totalorder %s331, %s334
      %p343 = scmp.eq.s32.totalorder %s43, 3
      %p344 = por %p342, %p343
      %p345 = scmp.ne.s32.totalorder %s334, %s335
      %p346 = scmp.eq.s32.totalorder %s43, 0
      %p347 = por %p345, %p346
      %p348 = scmp.ne.s32.totalorder %s334, %s335
      %p349 = scmp.eq.s32.totalorder %s44, 3
      %p350 = por %p348, %p349
      %p352 = scmp.ne.s32.totalorder %s335, %s351
      %p353 = scmp.eq.s32.totalorder %s44, 0
      %p354 = por %p352, %p353
      %s355 = ssub.s32 %s46, %s53
      %p356 = scmp.eq.s32.totalorder %s355, 0
      %s358 = sadd.s32 %s357, 1
      %s359 = scalar_select %p356, %s357, %s358
      %p362 = pneg %p356
      %p363 = scmp.eq.s32.totalorder %s38, 3
      %p364 = por %p362, %p363
      %p365 = scmp.ne.s32.totalorder %s357, %s360
      %p366 = scmp.eq.s32.totalorder %s38, 0
      %p367 = por %p365, %p366
      %p368 = scmp.ne.s32.totalorder %s357, %s360
      %p369 = scmp.eq.s32.totalorder %s43, 3
      %p370 = por %p368, %p369
      %p371 = scmp.ne.s32.totalorder %s360, %s361
      %p372 = scmp.eq.s32.totalorder %s43, 0
      %p373 = por %p371, %p372
      %p374 = scmp.ne.s32.totalorder %s360, %s361
      %p375 = scmp.eq.s32.totalorder %s44, 3
      %p376 = por %p374, %p375
      %p378 = scmp.ne.s32.totalorder %s361, %s377
      %p379 = scmp.eq.s32.totalorder %s44, 0
      %p380 = por %p378, %p379
      %s381 = ssub.s32 %s46, %s53
      %p382 = scmp.eq.s32.totalorder %s381, 0
      %s384 = sadd.s32 %s383, 1
      %s385 = scalar_select %p382, %s383, %s384
      %p388 = pneg %p382
      %p389 = scmp.eq.s32.totalorder %s38, 3
      %p390 = por %p388, %p389
      %p391 = scmp.ne.s32.totalorder %s383, %s386
      %p392 = scmp.eq.s32.totalorder %s38, 0
      %p393 = por %p391, %p392
      %p394 = scmp.ne.s32.totalorder %s383, %s386
      %p395 = scmp.eq.s32.totalorder %s43, 3
      %p396 = por %p394, %p395
      %p397 = scmp.ne.s32.totalorder %s386, %s387
      %p398 = scmp.eq.s32.totalorder %s43, 0
      %p399 = por %p397, %p398
      %p400 = scmp.ne.s32.totalorder %s386, %s387
      %p401 = scmp.eq.s32.totalorder %s44, 3
      %p402 = por %p400, %p401
      %p404 = scmp.ne.s32.totalorder %s387, %s403
      %p405 = scmp.eq.s32.totalorder %s44, 0
      %p406 = por %p404, %p405
      %s407 = ssub.s32 %s46, %s53
      %p408 = scmp.eq.s32.totalorder %s407, 0
      %s410 = sadd.s32 %s409, 1
      %s411 = scalar_select %p408, %s409, %s410
      %p414 = pneg %p408
      %p415 = scmp.eq.s32.totalorder %s38, 3
      %p416 = por %p414, %p415
      %p417 = scmp.ne.s32.totalorder %s409, %s412
      %p418 = scmp.eq.s32.totalorder %s38, 0
      %p419 = por %p417, %p418
      %p420 = scmp.ne.s32.totalorder %s409, %s412
      %p421 = scmp.eq.s32.totalorder %s43, 3
      %p422 = por %p420, %p421
      %p423 = scmp.ne.s32.totalorder %s412, %s413
      %p424 = scmp.eq.s32.totalorder %s43, 0
      %p425 = por %p423, %p424
      %p426 = scmp.ne.s32.totalorder %s412, %s413
      %p427 = scmp.eq.s32.totalorder %s44, 3
      %p428 = por %p426, %p427
      %p430 = scmp.ne.s32.totalorder %s413, %s429
      %p431 = scmp.eq.s32.totalorder %s44, 0
      %p432 = por %p430, %p431
      %s433 = ssub.s32 %s46, %s53
      %p434 = scmp.eq.s32.totalorder %s433, 0
      %s436 = sadd.s32 %s435, 1
      %s437 = scalar_select %p434, %s435, %s436
      %p440 = pneg %p434
      %p441 = scmp.eq.s32.totalorder %s38, 3
      %p442 = por %p440, %p441
      %p443 = scmp.ne.s32.totalorder %s435, %s438
      %p444 = scmp.eq.s32.totalorder %s38, 0
      %p445 = por %p443, %p444
      %p446 = scmp.ne.s32.totalorder %s435, %s438
      %p447 = scmp.eq.s32.totalorder %s43, 3
      %p448 = por %p446, %p447
      %p449 = scmp.ne.s32.totalorder %s438, %s439
      %p450 = scmp.eq.s32.totalorder %s43, 0
      %p451 = por %p449, %p450
      %p452 = scmp.ne.s32.totalorder %s438, %s439
      %p453 = scmp.eq.s32.totalorder %s44, 3
      %p454 = por %p452, %p453
      %p456 = scmp.ne.s32.totalorder %s439, %s455
      %p457 = scmp.eq.s32.totalorder %s44, 0
      %p458 = por %p456, %p457
      %s459 = ssub.s32 %s46, %s53
      %s460 = ssub.s32 %s45, %s57
      %s461 = sor.u32 %s459, %s460
      %p462 = scmp.eq.s32.totalorder %s461, 0
      %s464 = sadd.s32 %s463, 1
      %s465 = scalar_select %p462, %s463, %s464
      %p468 = pneg %p462
      %p469 = scmp.eq.s32.totalorder %s38, 3
      %p470 = por %p468, %p469
      %p471 = scmp.ne.s32.totalorder %s463, %s466
      %p472 = scmp.eq.s32.totalorder %s38, 0
      %p473 = por %p471, %p472
      %p474 = scmp.ne.s32.totalorder %s463, %s466
      %p475 = scmp.eq.s32.totalorder %s43, 3
      %p476 = por %p474, %p475
      %p477 = scmp.ne.s32.totalorder %s466, %s467
      %p478 = scmp.eq.s32.totalorder %s43, 0
      %p479 = por %p477, %p478
      %p480 = scmp.ne.s32.totalorder %s466, %s467
      %p481 = scmp.eq.s32.totalorder %s44, 3
      %p482 = por %p480, %p481
      %p484 = scmp.ne.s32.totalorder %s467, %s483
      %p485 = scmp.eq.s32.totalorder %s44, 0
      %p486 = por %p484, %p485
      %s487 = ssub.s32 %s45, %s57
      %p488 = scmp.eq.s32.totalorder %s487, 0
      %s490 = sadd.s32 %s489, 1
      %s491 = scalar_select %p488, %s489, %s490
      %p494 = pneg %p488
      %p495 = scmp.eq.s32.totalorder %s38, 3
      %p496 = por %p494, %p495
      %p497 = scmp.ne.s32.totalorder %s489, %s492
      %p498 = scmp.eq.s32.totalorder %s38, 0
      %p499 = por %p497, %p498
      %p500 = scmp.ne.s32.totalorder %s489, %s492
      %p501 = scmp.eq.s32.totalorder %s43, 3
      %p502 = por %p500, %p501
      %p503 = scmp.ne.s32.totalorder %s492, %s493
      %p504 = scmp.eq.s32.totalorder %s43, 0
      %p505 = por %p503, %p504
      %p506 = scmp.ne.s32.totalorder %s492, %s493
      %p507 = scmp.eq.s32.totalorder %s44, 3
      %p508 = por %p506, %p507
      %p510 = scmp.ne.s32.totalorder %s493, %s509
      %p511 = scmp.eq.s32.totalorder %s44, 0
      %p512 = por %p510, %p511
      %s513 = ssub.s32 %s46, %s53
      %s514 = ssub.s32 %s45, %s57
      %s515 = sor.u32 %s513, %s514
      %p516 = scmp.eq.s32.totalorder %s515, 0
      %s518 = sadd.s32 %s517, 1
      %s519 = scalar_select %p516, %s517, %s518
      %p522 = pneg %p516
      %p523 = scmp.eq.s32.totalorder %s38, 3
      %p524 = por %p522, %p523
      %p525 = scmp.ne.s32.totalorder %s517, %s520
      %p526 = scmp.eq.s32.totalorder %s38, 0
      %p527 = por %p525, %p526
      %p528 = scmp.ne.s32.totalorder %s517, %s520
      %p529 = scmp.eq.s32.totalorder %s43, 3
      %p530 = por %p528, %p529
      %p531 = scmp.ne.s32.totalorder %s520, %s521
      %p532 = scmp.eq.s32.totalorder %s43, 0
      %p533 = por %p531, %p532
      %p534 = scmp.ne.s32.totalorder %s520, %s521
      %p535 = scmp.eq.s32.totalorder %s44, 3
      %p536 = por %p534, %p535
      %p538 = scmp.ne.s32.totalorder %s521, %s537
      %p539 = scmp.eq.s32.totalorder %s44, 0
      %p540 = por %p538, %p539
      %p541 = scmp.le.s32.totalorder 1, %s38
      %p542 = scmp.lt.s32.totalorder %s38, 5
      %p543 = pnand %p541, %p542
      %p544 = pneg %p543
      // Predicated region
      $region9: #{tpu_custom_call.1} parent=5 // pred_check
        _
      $region10: #{tpu_custom_call.1} parent=5 // pred_check_branch
        %546 = sbr.rel (%p543) target = $region12
      $region11: #{tpu_custom_call.1} parent=5 // pred_region
        %s547 = ssub.s32 %s38, 1
        // Predicated region
        $region13: #{tpu_custom_call.1} parent=11 // pred_check
          %p548 = pneg %p97
        $region14: #{tpu_custom_call.1} parent=11 // pred_check_branch
          %550 = sbr.rel (%p548) target = $region16
        $region15: #{tpu_custom_call.1} parent=11 // pred_region
          %552 = vsyncadd [#allocation7], 0
          %s554 = sshll.u32 %s1, 4
          %s555 = int_to_ptr.hbm [resolvable:$true] %s554
          %s556 = sshll.u32 [#allocation6], 4
          %s557 = int_to_ptr.vmem [resolvable:$true] %s556
          %559 = dma.hbm_to_vmem [thread:$0]  %s555, 32, %s557, [#allocation7]
        $region16: #{tpu_custom_call.1} parent=11 // pred_fallthru
          _
        // Predicated region
        $region17: #{tpu_custom_call.1} parent=11 // pred_check
          %p560 = pneg %p118
        $region18: #{tpu_custom_call.1} parent=11 // pred_check_branch
          %562 = sbr.rel (%p560) target = $region20
        $region19: #{tpu_custom_call.1} parent=11 // pred_region
          _
        $region20: #{tpu_custom_call.1} parent=11 // pred_fallthru
          _
        // Predicated region
        $region21: #{tpu_custom_call.1} parent=11 // pred_check
          %p563 = pneg %p139
        $region22: #{tpu_custom_call.1} parent=11 // pred_check_branch
          %565 = sbr.rel (%p563) target = $region24
        $region23: #{tpu_custom_call.1} parent=11 // pred_region
          %567 = vsyncadd [#allocation7], 0
          %s569 = sshll.u32 %s3, 4
          %s570 = int_to_ptr.hbm [resolvable:$true] %s569
          %s571 = sshll.u32 [#allocation8], 4
          %s572 = int_to_ptr.vmem [resolvable:$true] %s571
          %574 = dma.hbm_to_vmem [thread:$0]  %s570, 16, %s572, [#allocation7]
        $region24: #{tpu_custom_call.1} parent=11 // pred_fallthru
          _
      $region12: #{tpu_custom_call.1} parent=5 // pred_fallthru
        _
      %p575 = scmp.lt.s32.totalorder %s38, 4
      // Predicated region
      $region25: #{tpu_custom_call.1} parent=5 // pred_check
        %p576 = pneg %p575
      $region26: #{tpu_custom_call.1} parent=5 // pred_check_branch
        %578 = sbr.rel (%p576) target = $region28
      $region27: #{tpu_custom_call.1} parent=5 // pred_region
        // Predicated region
        $region29: #{tpu_custom_call.1} parent=27 // pred_check
          %p579 = pneg %p70
        $region30: #{tpu_custom_call.1} parent=27 // pred_check_branch
          %581 = sbr.rel (%p579) target = $region32
        $region31: #{tpu_custom_call.1} parent=27 // pred_region
          %s582 = sand.u32 %s60, 1
          %s583 = scalar_lea.sflag [#allocation4], %s582
          %s584 = sand.u32 %s60, 1
          %s585 = smul.addr %s584, 8
          %s586 = scalar_lea.vmem [#allocation3], %s585
          %588 = vsyncadd %s583, 0
          %s589 = smul.addr %s45, 8
          %s590 = scalar_lea.hbm %s0, %s589
          %s592 = sshll.u32 %s590, 4
          %s593 = int_to_ptr.hbm [resolvable:$true] %s592
          %s594 = sshll.u32 %s586, 4
          %s595 = int_to_ptr.vmem [resolvable:$true] %s594
          %597 = dma.hbm_to_vmem [thread:$0]  %s593, 128, %s595, %s583
        $region32: #{tpu_custom_call.1} parent=27 // pred_fallthru
          _
        // Predicated region
        $region33: #{tpu_custom_call.1} parent=27 // pred_check
          %p598 = pneg %p159
        $region34: #{tpu_custom_call.1} parent=27 // pred_check_branch
          %600 = sbr.rel (%p598) target = $region36
        $region35: #{tpu_custom_call.1} parent=27 // pred_region
          %p601 = scmp.lt.s32.totalorder %s46, 1
          %s602 = scalar_select %p601, %s46, 1
          %s603 = smul.addr %s602, 4
          %s604 = smul.addr %s603, 4
          %s605 = scalar_lea.vmem %s4, %s604
        $region36: #{tpu_custom_call.1} parent=27 // pred_fallthru
          _
        // Predicated region
        $region37: #{tpu_custom_call.1} parent=27 // pred_check
          %p606 = pneg %p185
        $region38: #{tpu_custom_call.1} parent=27 // pred_check_branch
          %608 = sbr.rel (%p606) target = $region40
        $region39: #{tpu_custom_call.1} parent=27 // pred_region
          %p609 = scmp.lt.s32.totalorder %s46, 1
          %s610 = scalar_select %p609, %s46, 1
          %s611 = scalar_lea.vmem %s5, %s610
        $region40: #{tpu_custom_call.1} parent=27 // pred_fallthru
          _
        // Predicated region
        $region41: #{tpu_custom_call.1} parent=27 // pred_check
          %p612 = pneg %p211
        $region42: #{tpu_custom_call.1} parent=27 // pred_check_branch
          %614 = sbr.rel (%p612) target = $region44
        $region43: #{tpu_custom_call.1} parent=27 // pred_region
          %p615 = scmp.lt.s32.totalorder %s46, 1
          %s616 = scalar_select %p615, %s46, 1
          %s617 = smul.addr %s616, 4
          %s618 = smul.addr %s617, 4
          %s619 = scalar_lea.vmem %s6, %s618
        $region44: #{tpu_custom_call.1} parent=27 // pred_fallthru
          _
        // Predicated region
        $region45: #{tpu_custom_call.1} parent=27 // pred_check
          %p620 = pneg %p237
        $region46: #{tpu_custom_call.1} parent=27 // pred_check_branch
          %622 = sbr.rel (%p620) target = $region48
        $region47: #{tpu_custom_call.1} parent=27 // pred_region
          %p623 = scmp.lt.s32.totalorder %s46, 1
          %s624 = scalar_select %p623, %s46, 1
          %s625 = scalar_lea.vmem %s7, %s624
        $region48: #{tpu_custom_call.1} parent=27 // pred_fallthru
          _
        // Predicated region
        $region49: #{tpu_custom_call.1} parent=27 // pred_check
          %p626 = pneg %p263
        $region50: #{tpu_custom_call.1} parent=27 // pred_check_branch
          %628 = sbr.rel (%p626) target = $region52
        $region51: #{tpu_custom_call.1} parent=27 // pred_region
          %p629 = scmp.lt.s32.totalorder %s46, 1
          %s630 = scalar_select %p629, %s46, 1
          %s631 = scalar_lea.vmem %s8, %s630
        $region52: #{tpu_custom_call.1} parent=27 // pred_fallthru
          _
        // Predicated region
        $region53: #{tpu_custom_call.1} parent=27 // pred_check
          %p632 = pneg %p289
        $region54: #{tpu_custom_call.1} parent=27 // pred_check_branch
          %634 = sbr.rel (%p632) target = $region56
        $region55: #{tpu_custom_call.1} parent=27 // pred_region
          %s635 = sand.u32 %s38, 1
          %s636 = scalar_lea.sflag [#allocation10], %s635
          %s637 = sand.u32 %s279, 1
          %s638 = scalar_lea.vmem [#allocation9], %s637
          %640 = vsyncadd %s636, 0
          %s641 = scalar_lea.hbm %s9, %s46
          %s643 = sshll.u32 %s641, 4
          %s644 = int_to_ptr.hbm [resolvable:$true] %s643
          %s645 = sshll.u32 %s638, 4
          %s646 = int_to_ptr.vmem [resolvable:$true] %s645
          %648 = dma.hbm_to_vmem [thread:$0]  %s644, 16, %s646, %s636
        $region56: #{tpu_custom_call.1} parent=27 // pred_fallthru
          _
        // Predicated region
        $region57: #{tpu_custom_call.1} parent=27 // pred_check
          %p649 = pneg %p315
        $region58: #{tpu_custom_call.1} parent=27 // pred_check_branch
          %651 = sbr.rel (%p649) target = $region60
        $region59: #{tpu_custom_call.1} parent=27 // pred_region
          %p652 = scmp.lt.s32.totalorder %s46, 1
          %s653 = scalar_select %p652, %s46, 1
          %s654 = smul.addr %s653, 4
          %s655 = smul.addr %s654, 4
          %s656 = scalar_lea.vmem %s10, %s655
        $region60: #{tpu_custom_call.1} parent=27 // pred_fallthru
          _
        // Predicated region
        $region61: #{tpu_custom_call.1} parent=27 // pred_check
          %p657 = pneg %p341
        $region62: #{tpu_custom_call.1} parent=27 // pred_check_branch
          %659 = sbr.rel (%p657) target = $region64
        $region63: #{tpu_custom_call.1} parent=27 // pred_region
          %p660 = scmp.lt.s32.totalorder %s46, 1
          %s661 = scalar_select %p660, %s46, 1
          %s662 = scalar_lea.vmem %s11, %s661
        $region64: #{tpu_custom_call.1} parent=27 // pred_fallthru
          _
        // Predicated region
        $region65: #{tpu_custom_call.1} parent=27 // pred_check
          %p663 = pneg %p367
        $region66: #{tpu_custom_call.1} parent=27 // pred_check_branch
          %665 = sbr.rel (%p663) target = $region68
        $region67: #{tpu_custom_call.1} parent=27 // pred_region
          %p666 = scmp.lt.s32.totalorder %s46, 1
          %s667 = scalar_select %p666, %s46, 1
          %s668 = smul.addr %s667, 8
          %s669 = smul.addr %s668, 4
          %s670 = scalar_lea.vmem %s12, %s669
        $region68: #{tpu_custom_call.1} parent=27 // pred_fallthru
          _
        // Predicated region
        $region69: #{tpu_custom_call.1} parent=27 // pred_check
          %p671 = pneg %p393
        $region70: #{tpu_custom_call.1} parent=27 // pred_check_branch
          %673 = sbr.rel (%p671) target = $region72
        $region71: #{tpu_custom_call.1} parent=27 // pred_region
          %p674 = scmp.lt.s32.totalorder %s46, 1
          %s675 = scalar_select %p674, %s46, 1
          %s676 = scalar_lea.vmem %s13, %s675
        $region72: #{tpu_custom_call.1} parent=27 // pred_fallthru
          _
        // Predicated region
        $region73: #{tpu_custom_call.1} parent=27 // pred_check
          %p677 = pneg %p419
        $region74: #{tpu_custom_call.1} parent=27 // pred_check_branch
          %679 = sbr.rel (%p677) target = $region76
        $region75: #{tpu_custom_call.1} parent=27 // pred_region
          %p680 = scmp.lt.s32.totalorder %s46, 1
          %s681 = scalar_select %p680, %s46, 1
          %s682 = scalar_lea.vmem %s14, %s681
        $region76: #{tpu_custom_call.1} parent=27 // pred_fallthru
          _
        // Predicated region
        $region77: #{tpu_custom_call.1} parent=27 // pred_check
          %p683 = pneg %p445
        $region78: #{tpu_custom_call.1} parent=27 // pred_check_branch
          %685 = sbr.rel (%p683) target = $region80
        $region79: #{tpu_custom_call.1} parent=27 // pred_region
          %s686 = sand.u32 %s38, 1
          %s687 = scalar_lea.sflag [#allocation10], %s686
          %s688 = sand.u32 %s435, 1
          %s689 = scalar_lea.vmem [#allocation11], %s688
          %691 = vsyncadd %s687, 0
          %s692 = scalar_lea.hbm %s15, %s46
          %s694 = sshll.u32 %s692, 4
          %s695 = int_to_ptr.hbm [resolvable:$true] %s694
          %s696 = sshll.u32 %s689, 4
          %s697 = int_to_ptr.vmem [resolvable:$true] %s696
          %699 = dma.hbm_to_vmem [thread:$0]  %s695, 16, %s697, %s687
        $region80: #{tpu_custom_call.1} parent=27 // pred_fallthru
          _
      $region28: #{tpu_custom_call.1} parent=5 // pred_fallthru
        _
      %p700 = scmp.le.s32.totalorder 1, %s38
      %p701 = scmp.lt.s32.totalorder %s38, 5
      %p702 = pnand %p700, %p701
      %p703 = pneg %p702
      // Predicated region
      $region81: #{tpu_custom_call.1} parent=5 // pred_check
        _
      $region82: #{tpu_custom_call.1} parent=5 // pred_check_branch
        %705 = sbr.rel (%p702) target = $region84
      $region83: #{tpu_custom_call.1} parent=5 // pred_region
        %s706 = ssub.s32 %s38, 1
        %s707 = sand.u32 %s63, 1
        %s708 = scalar_lea.sflag [#allocation4], %s707
        %s709 = sand.u32 %s63, 1
        %s710 = smul.addr %s709, 8
        %s711 = scalar_lea.vmem [#allocation3], %s710
        // Predicated region
        $region85: #{tpu_custom_call.1} parent=83 // pred_check
          %p712 = pneg %p76
        $region86: #{tpu_custom_call.1} parent=83 // pred_check_branch
          %714 = sbr.rel (%p712) target = $region88
        $region87: #{tpu_custom_call.1} parent=83 // pred_region
          %716 = dma.done %s708, 128
        $region88: #{tpu_custom_call.1} parent=83 // pred_fallthru
          _
        // Predicated region
        $region89: #{tpu_custom_call.1} parent=83 // pred_check
          %p717 = pneg %p97
        $region90: #{tpu_custom_call.1} parent=83 // pred_check_branch
          %719 = sbr.rel (%p717) target = $region92
        $region91: #{tpu_custom_call.1} parent=83 // pred_region
          %721 = dma.done [#allocation7], 32
        $region92: #{tpu_custom_call.1} parent=83 // pred_fallthru
          _
        // Predicated region
        $region93: #{tpu_custom_call.1} parent=83 // pred_check
          %p722 = pneg %p139
        $region94: #{tpu_custom_call.1} parent=83 // pred_check_branch
          %724 = sbr.rel (%p722) target = $region96
        $region95: #{tpu_custom_call.1} parent=83 // pred_region
          %726 = dma.done [#allocation7], 16
        $region96: #{tpu_custom_call.1} parent=83 // pred_fallthru
          _
        %s727 = sand.u32 %s43, 1
        %s728 = scalar_lea.sflag [#allocation10], %s727
        %s729 = sand.u32 %s282, 1
        %s730 = scalar_lea.vmem [#allocation9], %s729
        // Predicated region
        $region97: #{tpu_custom_call.1} parent=83 // pred_check
          %p731 = pneg %p295
        $region98: #{tpu_custom_call.1} parent=83 // pred_check_branch
          %733 = sbr.rel (%p731) target = $region100
        $region99: #{tpu_custom_call.1} parent=83 // pred_region
          %735 = dma.done %s728, 16
        $region100: #{tpu_custom_call.1} parent=83 // pred_fallthru
          _
        %s736 = sand.u32 %s43, 1
        %s737 = scalar_lea.sflag [#allocation10], %s736
        %s738 = sand.u32 %s438, 1
        %s739 = scalar_lea.vmem [#allocation11], %s738
        // Predicated region
        $region101: #{tpu_custom_call.1} parent=83 // pred_check
          %p740 = pneg %p451
        $region102: #{tpu_custom_call.1} parent=83 // pred_check_branch
          %742 = sbr.rel (%p740) target = $region104
        $region103: #{tpu_custom_call.1} parent=83 // pred_region
          %744 = dma.done %s737, 16
        $region104: #{tpu_custom_call.1} parent=83 // pred_fallthru
          _
        %s745 = sand.u32 %s63, 1
        %s746 = scalar_lea.sflag [#allocation4], %s745
        %s747 = sand.u32 %s63, 1
        %s748 = smul.addr %s747, 8
        %s749 = scalar_lea.vmem [#allocation3], %s748
        %p750 = pneg %p76
        %p751 = pneg %p73
        %p752 = pneg %p97
        %p753 = pneg %p94
        %p754 = pneg %p118
        %p755 = pneg %p115
        %p756 = pneg %p139
        %p757 = pneg %p136
        %p758 = scmp.lt.s32.totalorder %s48, 1
        %s759 = scalar_select %p758, %s48, 1
        %s760 = smul.addr %s759, 4
        %s761 = smul.addr %s760, 4
        %s762 = scalar_lea.vmem %s4, %s761
        %p763 = pneg %p165
        %p764 = pneg %p162
        %p765 = scmp.lt.s32.totalorder %s48, 1
        %s766 = scalar_select %p765, %s48, 1
        %s767 = scalar_lea.vmem %s5, %s766
        %p768 = pneg %p191
        %p769 = pneg %p188
        %p770 = scmp.lt.s32.totalorder %s48, 1
        %s771 = scalar_select %p770, %s48, 1
        %s772 = smul.addr %s771, 4
        %s773 = smul.addr %s772, 4
        %s774 = scalar_lea.vmem %s6, %s773
        %p775 = pneg %p217
        %p776 = pneg %p214
        %p777 = scmp.lt.s32.totalorder %s48, 1
        %s778 = scalar_select %p777, %s48, 1
        %s779 = scalar_lea.vmem %s7, %s778
        %p780 = pneg %p243
        %p781 = pneg %p240
        %p782 = scmp.lt.s32.totalorder %s48, 1
        %s783 = scalar_select %p782, %s48, 1
        %s784 = scalar_lea.vmem %s8, %s783
        %p785 = pneg %p269
        %p786 = pneg %p266
        %s787 = sand.u32 %s43, 1
        %s788 = scalar_lea.sflag [#allocation10], %s787
        %s789 = sand.u32 %s282, 1
        %s790 = scalar_lea.vmem [#allocation9], %s789
        %p791 = pneg %p295
        %p792 = pneg %p292
        %p793 = scmp.lt.s32.totalorder %s48, 1
        %s794 = scalar_select %p793, %s48, 1
        %s795 = smul.addr %s794, 4
        %s796 = smul.addr %s795, 4
        %s797 = scalar_lea.vmem %s10, %s796
        %p798 = pneg %p321
        %p799 = pneg %p318
        %p800 = scmp.lt.s32.totalorder %s48, 1
        %s801 = scalar_select %p800, %s48, 1
        %s802 = scalar_lea.vmem %s11, %s801
        %p803 = pneg %p347
        %p804 = pneg %p344
        %p805 = scmp.lt.s32.totalorder %s48, 1
        %s806 = scalar_select %p805, %s48, 1
        %s807 = smul.addr %s806, 8
        %s808 = smul.addr %s807, 4
        %s809 = scalar_lea.vmem %s12, %s808
        %p810 = pneg %p373
        %p811 = pneg %p370
        %p812 = scmp.lt.s32.totalorder %s48, 1
        %s813 = scalar_select %p812, %s48, 1
        %s814 = scalar_lea.vmem %s13, %s813
        %p815 = pneg %p399
        %p816 = pneg %p396
        %p817 = scmp.lt.s32.totalorder %s48, 1
        %s818 = scalar_select %p817, %s48, 1
        %s819 = scalar_lea.vmem %s14, %s818
        %p820 = pneg %p425
        %p821 = pneg %p422
        %s822 = sand.u32 %s43, 1
        %s823 = scalar_lea.sflag [#allocation10], %s822
        %s824 = sand.u32 %s438, 1
        %s825 = scalar_lea.vmem [#allocation11], %s824
        %p826 = pneg %p451
        %p827 = pneg %p448
        %p828 = pneg %p479
        %p829 = pneg %p476
        %s830 = sand.u32 %s466, 1
        %s831 = scalar_lea.sflag [#allocation5], %s830
        %s832 = sand.u32 %s466, 1
        %s833 = smul.addr %s832, 4
        %s834 = scalar_lea.vmem [#allocation12], %s833
        %p835 = pneg %p505
        %p836 = pneg %p502
        %s837 = sand.u32 %s43, 1
        %s838 = scalar_lea.sflag [#allocation14], %s837
        %s839 = sand.u32 %s492, 1
        %s840 = smul.addr %s839, 8
        %s841 = scalar_lea.vmem [#allocation13], %s840
        %p842 = pneg %p533
        %p843 = pneg %p530
        %s844 = sand.u32 %s43, 1
        %s845 = scalar_lea.sflag [#allocation14], %s844
        %s846 = sand.u32 %s520, 1
        %s847 = smul.addr %s846, 8
        %s848 = scalar_lea.vmem [#allocation15], %s847
        %p849 = scmp.lt.s32.totalorder %s48, 1
        %s850 = scalar_select %p849, %s48, 1
        %s851 = smul.addr %s850, 4
        %s852 = smul.addr %s851, 4
        %s853 = scalar_lea.vmem %s4, %s852
        %p854 = scmp.lt.s32.totalorder %s48, 1
        %s855 = scalar_select %p854, %s48, 1
        %s856 = scalar_lea.vmem %s5, %s855
        %p857 = scmp.lt.s32.totalorder %s48, 1
        %s858 = scalar_select %p857, %s48, 1
        %s859 = smul.addr %s858, 4
        %s860 = smul.addr %s859, 4
        %s861 = scalar_lea.vmem %s6, %s860
        %p862 = scmp.lt.s32.totalorder %s48, 1
        %s863 = scalar_select %p862, %s48, 1
        %s864 = scalar_lea.vmem %s7, %s863
        %p865 = scmp.lt.s32.totalorder %s48, 1
        %s866 = scalar_select %p865, %s48, 1
        %s867 = scalar_lea.vmem %s8, %s866
        %p868 = scmp.lt.s32.totalorder %s48, 1
        %s869 = scalar_select %p868, %s48, 1
        %s870 = smul.addr %s869, 4
        %s871 = smul.addr %s870, 4
        %s872 = scalar_lea.vmem %s10, %s871
        %p873 = scmp.lt.s32.totalorder %s48, 1
        %s874 = scalar_select %p873, %s48, 1
        %s875 = scalar_lea.vmem %s11, %s874
        %p876 = scmp.lt.s32.totalorder %s48, 1
        %s877 = scalar_select %p876, %s48, 1
        %s878 = smul.addr %s877, 8
        %s879 = smul.addr %s878, 4
        %s880 = scalar_lea.vmem %s12, %s879
        %p881 = scmp.lt.s32.totalorder %s48, 1
        %s882 = scalar_select %p881, %s48, 1
        %s883 = scalar_lea.vmem %s13, %s882
        %p884 = scmp.lt.s32.totalorder %s48, 1
        %s885 = scalar_select %p884, %s48, 1
        %s886 = scalar_lea.vmem %s14, %s885
        %p888 = scmp.eq.s32.totalorder %s48, 0
        // Predicated region
        $region105: #{tpu_custom_call.1} parent=83 // pred_check
          %p889 = pneg %p888
        $region106: #{tpu_custom_call.1} parent=83 // pred_check_branch
          %891 = sbr.rel (%p889) target = $region108
        $region107: #{tpu_custom_call.1} parent=83 // pred_region
          %v892 = vld [vmem:[%s711] sm:$0xff]
          %v893 = vld [vmem:[%s2] sm:$0x1]
          %v894 = vld [vmem:[#allocation8] sm:$0x1]
          %vm895 = vcmask 261120
          %v896 = vsel %vm895, %v892, 0.0
          %897 = vadd.xlane.f32.xlu0 %v896
          %v898 = vpop.xlane.xlu0 %897
          %v899 = vrcp.pop 32.0
          %v900 = vmul.f32 32.0, %v899
          %v901 = vsub.f32 1.0, %v900
          %v902 = vmul.f32 %v899, %v901
          %v903 = vadd.f32 %v899, %v902
          %vm904 = vweird.f32 %v899
          %v905 = vsel %vm904, %v899, %v903
          %v906 = vmul.f32 %v898, %v905
          %v907 = vsub.f32 %v892, %v906
          %v908 = vmul.f32 %v907, %v907
          %v909 = vsel %vm895, %v908, 0.0
          %910 = vadd.xlane.f32.xlu0 %v909
          %v911 = vpop.xlane.xlu0 %910
          %v912 = vmul.f32 %v911, %v905
          %v913 = vadd.f32 %v912, 1e-12
          %v914 = vrsqrt.pop %v913
          %v915 = vmul.f32 %v914, %v913
          %v916 = vmul.f32 %v915, %v914
          %v917 = vmul.f32 0.5, %v916
          %v918 = vsub.f32 1.5, %v917
          %v919 = vmul.f32 %v914, %v918
          %vm920 = vweird.f32 %v913
          %vm921 = vweird.f32 %v914
          %vm922 = vmor %vm920, %vm921
          %v923 = vsel %vm922, %v914, %v919
          %v924 = vmul.f32 %v907, %v923
          %v926 = vperm.slane %v893, 0
          %v928 = vmul.f32 %v924, %v926
          %v930 = vperm.slane %v894, 0
          %v932 = vadd.f32 %v928, %v930
          %933 = vst.msk [vmem:[#allocation2] sm:$0xff] %vm895, %v932
          %934 = vst.msk [vmem:[%s841] sm:$0xff] %vm895, %v932
        $region108: #{tpu_custom_call.1} parent=83 // pred_fallthru
          _
        %v935 = vld [vmem:[#allocation2] sm:$0xff]
        %v936 = vpack.c.bf16 %v935, %v935
        %v937 = vld [vmem:[%s853] sm:$0xf]
        %v938 = vld [vmem:[%s853 + $0x4] sm:$0xf]
        %v939 = vld [vmem:[%s853 + $0x8] sm:$0xf]
        %v940 = vld [vmem:[%s853 + $0xc] sm:$0xf]
        %v941 = vld [vmem:[%s856] sm:$0x1]
        %v943 = vperm.slane %v941, 0
        %v949 = vunpack.c.l.b16 %v937
        %v950 = vunpack.c.l.b16 %v938
        %v951 = vunpack.c.l.b16 %v939
        %v952 = vunpack.c.l.b16 %v940
        %v953 = vpack.c.b16 %v950, %v949
        %v954 = vpack.c.b16 %v952, %v951
        %vm957 = vcmask 261120
        %v959 = vsel %vm957, %v936, 0
        %961 = vmatpush.bf16.msra.mxu0 0
        %962 = vmatpush.bf16.msra.mxu0 0
        %963 = vmatpush.bf16.msra.mxu0 0
        %964 = vmatpush.bf16.msra.mxu0 0
        %965 = vmatpush.bf16.msra.mxu0 0
        %966 = vmatpush.bf16.msra.mxu0 0
        %967 = vmatpush.bf16.msra.mxu0 %v954
        %968 = vmatpush.bf16.msra.mxu0 %v953
        %969 = vmatmul.bf16.gmra.mxu0 %v959
        %v970 = vpop.f32.mrf.mxu0
        %v971 = vadd.f32 %v943, %v970
        %v972 = vpop.f32.mrf.mxu0
        %973 = vdwg.mxu0
        %975 = vrot.lane.b32.xlu0 %v971, 112
        %v976 = vpop.permute.xlu0 %975
        %v978 = vpack.c.bf16 %v971, %v971
        %v979 = vpack.c.bf16 %v976, %v976
        %s980 = scalar_lea.vmem [#allocation6], %s47
        %v981 = vld [vmem:[%s980] sm:$0x1]
        %v982 = vperm.slane %v981, 0
        %v984 = vunpack.c.l.b16 %v978
        %v985 = vpack.c.b16 %v984, %v984
        %986 = vrot.lane.b32.xlu0 %v985, 96
        %v987 = vpop.permute.xlu0 %986
        %vm988 = vcmask 130048
        %v990 = vsel %vm988, %v978, 0
        %v993 = vsel %vm988, %v987, 0
        %995 = vmatpush.bf16.xpose.msra.mxu0 0
        %996 = vmatpush.bf16.xpose.msra.mxu0 0
        %997 = vmatpush.bf16.xpose.msra.mxu0 0
        %998 = vmatpush.bf16.xpose.msra.mxu0 0
        %999 = vmatpush.bf16.xpose.msra.mxu0 0
        %1000 = vmatpush.bf16.xpose.msra.mxu0 0
        %1001 = vmatpush.bf16.xpose.msra.mxu0 0
        %1002 = vmatpush.bf16.xpose.msra.mxu0 %v993
        %1003 = vmatmul.bf16.gmra.mxu0 %v990
        %v1004 = vpop.f32.mrf.mxu0
        %v1005 = vadd.f32 %v982, %v1004
        %v1006 = vpop.f32.mrf.mxu0
        %1007 = vdwg.mxu0
        %v1009 = vunpack.c.l.b16 %v979
        %v1010 = vpack.c.b16 %v1009, %v1009
        %1011 = vrot.lane.b32.xlu0 %v1010, 96
        %v1012 = vpop.permute.xlu0 %1011
        %v1014 = vsel %vm988, %v979, 0
        %v1017 = vsel %vm988, %v1012, 0
        %1019 = vmatpush.bf16.xpose.msra.mxu0 0
        %1020 = vmatpush.bf16.xpose.msra.mxu0 0
        %1021 = vmatpush.bf16.xpose.msra.mxu0 0
        %1022 = vmatpush.bf16.xpose.msra.mxu0 0
        %1023 = vmatpush.bf16.xpose.msra.mxu0 0
        %1024 = vmatpush.bf16.xpose.msra.mxu0 0
        %1025 = vmatpush.bf16.xpose.msra.mxu0 0
        %1026 = vmatpush.bf16.xpose.msra.mxu0 %v1017
        %1027 = vmatmul.bf16.gmra.mxu0 %v1014
        %v1028 = vpop.f32.mrf.mxu0
        %v1029 = vadd.f32 %v982, %v1028
        %v1030 = vpop.f32.mrf.mxu0
        %1031 = vdwg.mxu0
        %vm1032 = vcmask 64512
        %v1033 = vsel %vm1032, %v1005, -inf
        %1034 = vmax.xlane.f32.xlu0 %v1033
        %v1035 = vpop.xlane.xlu0 %1034
        %v1036 = vsel %vm1032, %v1029, -inf
        %1037 = vmax.xlane.f32.xlu0 %v1036
        %v1038 = vpop.xlane.xlu0 %1037
        %v1039 = vsub.f32 %v1005, %v1035
        %v1040 = vsub.f32 %v1029, %v1038
        %v1041 = vmul.f32 %v1039, 1.442695
        %v1042 = vpow.pop %v1041
        %v1043 = vmul.f32 %v1040, 1.442695
        %v1044 = vpow.pop %v1043
        %v1045 = vsel %vm1032, %v1042, 0.0
        %1046 = vadd.xlane.f32.xlu0 %v1045
        %v1047 = vpop.xlane.xlu0 %1046
        %v1048 = vsel %vm1032, %v1044, 0.0
        %1049 = vadd.xlane.f32.xlu0 %v1048
        %v1050 = vpop.xlane.xlu0 %1049
        %v1051 = vrcp.pop %v1047
        %v1052 = vmul.f32 %v1047, %v1051
        %v1053 = vsub.f32 1.0, %v1052
        %v1054 = vmul.f32 %v1051, %v1053
        %v1055 = vadd.f32 %v1051, %v1054
        %vm1056 = vweird.f32 %v1047
        %vm1057 = vweird.f32 %v1051
        %vm1058 = vmor %vm1056, %vm1057
        %v1059 = vsel %vm1058, %v1051, %v1055
        %v1060 = vand.u32 2147483647, %v1047
        %vm1061 = vcmp.eq.f32.partialorder %v1060, 8.507059e+37
        %v1062 = vand.u32 %v1047, 2147483648
        %v1063 = vor.u32 1.1754944e-38, %v1062
        %v1064 = vsel %vm1061, %v1063, %v1059
        %v1065 = vmul.f32 %v1042, %v1064
        %v1066 = vrcp.pop %v1050
        %v1067 = vmul.f32 %v1050, %v1066
        %v1068 = vsub.f32 1.0, %v1067
        %v1069 = vmul.f32 %v1066, %v1068
        %v1070 = vadd.f32 %v1066, %v1069
        %vm1071 = vweird.f32 %v1050
        %vm1072 = vweird.f32 %v1066
        %vm1073 = vmor %vm1071, %vm1072
        %v1074 = vsel %vm1073, %v1066, %v1070
        %v1075 = vand.u32 2147483647, %v1050
        %vm1076 = vcmp.eq.f32.partialorder %v1075, 8.507059e+37
        %v1077 = vand.u32 %v1050, 2147483648
        %v1078 = vor.u32 1.1754944e-38, %v1077
        %v1079 = vsel %vm1076, %v1078, %v1074
        %v1080 = vmul.f32 %v1044, %v1079
        %v1081 = vpack.c.bf16 %v1065, %v1065
        %v1082 = vpack.c.bf16 %v1080, %v1080
        %vm1083 = vcmask 60416
        %1084 = vst.msk [vmem:[%s848] sm:$0xf] %vm1083, %v1081
        %1085 = vst.msk [vmem:[%s848 + $0x4] sm:$0xf] %vm1083, %v1082
        %1086 = vrot.lane.b32.xlu0 %v985, 64
        %v1087 = vpop.permute.xlu0 %1086
        %v1089 = vsel %vm1032, %v1081, 0
        %vm1091 = vcmask 1043456
        %v1093 = vsel %vm1091, %v1087, 0
        %1095 = vmatpush.bf16.msra.mxu0 0
        %1096 = vmatpush.bf16.msra.mxu0 0
        %1097 = vmatpush.bf16.msra.mxu0 0
        %1098 = vmatpush.bf16.msra.mxu0 0
        %1099 = vmatpush.bf16.msra.mxu0 0
        %1100 = vmatpush.bf16.msra.mxu0 0
        %1101 = vmatpush.bf16.msra.mxu0 0
        %1102 = vmatpush.bf16.msra.mxu0 %v1093
        %1103 = vmatmul.bf16.gmra.mxu0 %v1089
        %v1104 = vpop.f32.mrf.mxu0
        %v1105 = vadd.f32 0.0, %v1104
        %v1106 = vpop.f32.mrf.mxu0
        %1107 = vdwg.mxu0
        %1108 = vrot.lane.b32.xlu0 %v1010, 64
        %v1109 = vpop.permute.xlu0 %1108
        %v1111 = vsel %vm1032, %v1082, 0
        %v1114 = vsel %vm1091, %v1109, 0
        %1116 = vmatpush.bf16.msra.mxu0 0
        %1117 = vmatpush.bf16.msra.mxu0 0
        %1118 = vmatpush.bf16.msra.mxu0 0
        %1119 = vmatpush.bf16.msra.mxu0 0
        %1120 = vmatpush.bf16.msra.mxu0 0
        %1121 = vmatpush.bf16.msra.mxu0 0
        %1122 = vmatpush.bf16.msra.mxu0 0
        %1123 = vmatpush.bf16.msra.mxu0 %v1114
        %1124 = vmatmul.bf16.gmra.mxu0 %v1111
        %v1125 = vpop.f32.mrf.mxu0
        %v1126 = vadd.f32 0.0, %v1125
        %v1127 = vpop.f32.mrf.mxu0
        %1128 = vdwg.mxu0
        %1130 = vrot.lane.b32.xlu0 %v1126, 16
        %v1131 = vpop.permute.xlu0 %1130
        %v1133 = vsel %vm988, %v1105, %v1131
        %v1134 = vpack.c.bf16 %v1133, %v1133
        %v1135 = vld [vmem:[%s861] sm:$0xf]
        %v1136 = vld [vmem:[%s861 + $0x4] sm:$0xf]
        %v1137 = vld [vmem:[%s861 + $0x8] sm:$0xf]
        %v1138 = vld [vmem:[%s861 + $0xc] sm:$0xf]
        %v1139 = vld [vmem:[%s864] sm:$0x1]
        %v1141 = vperm.slane %v1139, 0
        %v1147 = vunpack.c.l.b16 %v1135
        %v1148 = vunpack.c.l.b16 %v1136
        %v1149 = vunpack.c.l.b16 %v1137
        %v1150 = vunpack.c.l.b16 %v1138
        %v1151 = vpack.c.b16 %v1148, %v1147
        %v1152 = vpack.c.b16 %v1150, %v1149
        %v1156 = vsel %vm957, %v1134, 0
        %1158 = vmatpush.bf16.msra.mxu0 0
        %1159 = vmatpush.bf16.msra.mxu0 0
        %1160 = vmatpush.bf16.msra.mxu0 0
        %1161 = vmatpush.bf16.msra.mxu0 0
        %1162 = vmatpush.bf16.msra.mxu0 0
        %1163 = vmatpush.bf16.msra.mxu0 0
        %1164 = vmatpush.bf16.msra.mxu0 %v1152
        %1165 = vmatpush.bf16.msra.mxu0 %v1151
        %1166 = vmatmul.bf16.gmra.mxu0 %v1156
        %v1167 = vpop.f32.mrf.mxu0
        %v1168 = vadd.f32 %v1141, %v1167
        %v1169 = vpop.f32.mrf.mxu0
        %1170 = vdwg.mxu0
        %v1171 = vadd.f32 %v935, %v1168
        %v1172 = vld [vmem:[%s867] sm:$0x1]
        %v1173 = vld [vmem:[%s730] sm:$0x1]
        %v1174 = vsel %vm957, %v1171, 0.0
        %1175 = vadd.xlane.f32.xlu0 %v1174
        %v1176 = vpop.xlane.xlu0 %1175
        %v1177 = vrcp.pop 32.0
        %v1178 = vmul.f32 32.0, %v1177
        %v1179 = vsub.f32 1.0, %v1178
        %v1180 = vmul.f32 %v1177, %v1179
        %v1181 = vadd.f32 %v1177, %v1180
        %vm1182 = vweird.f32 %v1177
        %v1183 = vsel %vm1182, %v1177, %v1181
        %v1184 = vmul.f32 %v1176, %v1183
        %v1185 = vsub.f32 %v1171, %v1184
        %v1186 = vmul.f32 %v1185, %v1185
        %v1187 = vsel %vm957, %v1186, 0.0
        %1188 = vadd.xlane.f32.xlu0 %v1187
        %v1189 = vpop.xlane.xlu0 %1188
        %v1190 = vmul.f32 %v1189, %v1183
        %v1191 = vadd.f32 %v1190, 1e-12
        %v1192 = vrsqrt.pop %v1191
        %v1193 = vmul.f32 %v1192, %v1191
        %v1194 = vmul.f32 %v1193, %v1192
        %v1195 = vmul.f32 0.5, %v1194
        %v1196 = vsub.f32 1.5, %v1195
        %v1197 = vmul.f32 %v1192, %v1196
        %vm1198 = vweird.f32 %v1191
        %vm1199 = vweird.f32 %v1192
        %vm1200 = vmor %vm1198, %vm1199
        %v1201 = vsel %vm1200, %v1192, %v1197
        %v1202 = vmul.f32 %v1185, %v1201
        %v1204 = vperm.slane %v1172, 0
        %v1206 = vmul.f32 %v1202, %v1204
        %v1208 = vperm.slane %v1173, 0
        %v1210 = vadd.f32 %v1206, %v1208
        %v1211 = vpack.c.bf16 %v1210, %v1210
        %v1212 = vld [vmem:[%s872] sm:$0xf]
        %v1213 = vld [vmem:[%s872 + $0x4] sm:$0xf]
        %v1214 = vld [vmem:[%s872 + $0x8] sm:$0xf]
        %v1215 = vld [vmem:[%s872 + $0xc] sm:$0xf]
        %v1216 = vld [vmem:[%s875] sm:$0x1]
        %v1218 = vperm.slane %v1216, 0
        %v1224 = vunpack.c.l.b16 %v1212
        %v1225 = vunpack.c.l.b16 %v1213
        %v1226 = vunpack.c.l.b16 %v1214
        %v1227 = vunpack.c.l.b16 %v1215
        %v1228 = vpack.c.b16 %v1225, %v1224
        %v1229 = vpack.c.b16 %v1227, %v1226
        %v1233 = vsel %vm957, %v1211, 0
        %1235 = vmatpush.bf16.msra.mxu0 0
        %1236 = vmatpush.bf16.msra.mxu0 0
        %1237 = vmatpush.bf16.msra.mxu0 0
        %1238 = vmatpush.bf16.msra.mxu0 0
        %1239 = vmatpush.bf16.msra.mxu0 0
        %1240 = vmatpush.bf16.msra.mxu0 0
        %1241 = vmatpush.bf16.msra.mxu0 %v1229
        %1242 = vmatpush.bf16.msra.mxu0 %v1228
        %1243 = vmatmul.bf16.gmra.mxu0 %v1233
        %v1244 = vpop.f32.mrf.mxu0
        %v1245 = vadd.f32 %v1218, %v1244
        %v1246 = vpop.f32.mrf.mxu0
        %1247 = vdwg.mxu0
        %v1248 = vmul.f32 %v1245, %v1245
        %v1249 = vmul.f32 %v1245, %v1248
        %v1250 = vmul.f32 %v1249, 0.044715
        %v1251 = vadd.f32 %v1245, %v1250
        %v1252 = vmul.f32 %v1251, 0.7978846
        %v1253 = vtanh.pop %v1252
        %v1254 = vadd.f32 %v1253, 1.0
        %v1255 = vmul.f32 %v1254, 0.5
        %v1256 = vmul.f32 %v1245, %v1255
        %v1257 = vpack.c.bf16 %v1256, %v1256
        %v1258 = vld [vmem:[%s880] sm:$0xf]
        %v1259 = vld [vmem:[%s880 + $0x4] sm:$0xf]
        %v1260 = vld [vmem:[%s880 + $0x8] sm:$0xf]
        %v1261 = vld [vmem:[%s880 + $0xc] sm:$0xf]
        %v1262 = vld [vmem:[%s880 + $0x10] sm:$0xf]
        %v1263 = vld [vmem:[%s880 + $0x14] sm:$0xf]
        %v1264 = vld [vmem:[%s880 + $0x18] sm:$0xf]
        %v1265 = vld [vmem:[%s880 + $0x1c] sm:$0xf]
        %v1266 = vld [vmem:[%s883] sm:$0x1]
        %v1268 = vperm.slane %v1266, 0
        %v1278 = vunpack.c.l.b16 %v1258
        %v1279 = vunpack.c.l.b16 %v1259
        %v1280 = vunpack.c.l.b16 %v1260
        %v1281 = vunpack.c.l.b16 %v1261
        %v1282 = vunpack.c.l.b16 %v1262
        %v1283 = vunpack.c.l.b16 %v1263
        %v1284 = vunpack.c.l.b16 %v1264
        %v1285 = vunpack.c.l.b16 %v1265
        %v1286 = vpack.c.b16 %v1279, %v1278
        %v1287 = vpack.c.b16 %v1281, %v1280
        %v1288 = vpack.c.b16 %v1283, %v1282
        %v1289 = vpack.c.b16 %v1285, %v1284
        %vm1294 = vcmask 523264
        %v1296 = vsel %vm1294, %v1257, 0
        %1298 = vmatpush.bf16.msra.mxu0 0
        %1299 = vmatpush.bf16.msra.mxu0 0
        %1300 = vmatpush.bf16.msra.mxu0 0
        %1301 = vmatpush.bf16.msra.mxu0 0
        %1302 = vmatpush.bf16.msra.mxu0 %v1289
        %1303 = vmatpush.bf16.msra.mxu0 %v1288
        %1304 = vmatpush.bf16.msra.mxu0 %v1287
        %1305 = vmatpush.bf16.msra.mxu0 %v1286
        %1306 = vmatmul.bf16.gmra.mxu0 %v1296
        %v1307 = vpop.f32.mrf.mxu0
        %v1308 = vadd.f32 %v1268, %v1307
        %v1309 = vpop.f32.mrf.mxu0
        %1310 = vdwg.mxu0
        %v1311 = vadd.f32 %v1210, %v1308
        %v1312 = vld [vmem:[%s886] sm:$0x1]
        %v1313 = vld [vmem:[%s739] sm:$0x1]
        %v1314 = vsel %vm957, %v1311, 0.0
        %1315 = vadd.xlane.f32.xlu0 %v1314
        %v1316 = vpop.xlane.xlu0 %1315
        %v1317 = vmul.f32 %v1316, %v1183
        %v1318 = vsub.f32 %v1311, %v1317
        %v1319 = vmul.f32 %v1318, %v1318
        %v1320 = vsel %vm957, %v1319, 0.0
        %1321 = vadd.xlane.f32.xlu0 %v1320
        %v1322 = vpop.xlane.xlu0 %1321
        %v1323 = vmul.f32 %v1322, %v1183
        %v1324 = vadd.f32 %v1323, 1e-12
        %v1325 = vrsqrt.pop %v1324
        %v1326 = vmul.f32 %v1325, %v1324
        %v1327 = vmul.f32 %v1326, %v1325
        %v1328 = vmul.f32 0.5, %v1327
        %v1329 = vsub.f32 1.5, %v1328
        %v1330 = vmul.f32 %v1325, %v1329
        %vm1331 = vweird.f32 %v1324
        %vm1332 = vweird.f32 %v1325
        %vm1333 = vmor %vm1331, %vm1332
        %v1334 = vsel %vm1333, %v1325, %v1330
        %v1335 = vmul.f32 %v1318, %v1334
        %v1337 = vperm.slane %v1312, 0
        %v1339 = vmul.f32 %v1335, %v1337
        %v1341 = vperm.slane %v1313, 0
        %v1343 = vadd.f32 %v1339, %v1341
        %1344 = vst.msk [vmem:[#allocation2] sm:$0xff] %vm957, %v1343
        %v1345 = vpack.c.bf16 %v1343, %v1343
        %vm1346 = vcmask 257024
        %1347 = vst.msk [vmem:[%s834] sm:$0xf] %vm1346, %v1345
        %s1348 = sand.u32 %s466, 1
        %s1349 = scalar_lea.sflag [#allocation5], %s1348
        %s1350 = sand.u32 %s466, 1
        %s1351 = smul.addr %s1350, 4
        %s1352 = scalar_lea.vmem [#allocation12], %s1351
        %s1353 = sand.u32 %s43, 1
        %s1354 = scalar_lea.sflag [#allocation14], %s1353
        %s1355 = sand.u32 %s492, 1
        %s1356 = smul.addr %s1355, 8
        %s1357 = scalar_lea.vmem [#allocation13], %s1356
        %s1358 = sand.u32 %s43, 1
        %s1359 = scalar_lea.sflag [#allocation14], %s1358
        %s1360 = sand.u32 %s520, 1
        %s1361 = smul.addr %s1360, 8
        %s1362 = scalar_lea.vmem [#allocation15], %s1361
        // Predicated region
        $region109: #{tpu_custom_call.1} parent=83 // pred_check
          %p1363 = pneg %p476
        $region110: #{tpu_custom_call.1} parent=83 // pred_check_branch
          %1365 = sbr.rel (%p1363) target = $region112
        $region111: #{tpu_custom_call.1} parent=83 // pred_region
          %1367 = vsyncadd %s1349, 0
          %s1368 = smul.addr %s48, 2
          %s1369 = sadd.s32 %s47, %s1368
          %s1370 = smul.addr %s1369, 4
          %s1371 = scalar_lea.hbm %s16, %s1370
          %s1373 = sshll.u32 %s1352, 4
          %s1374 = int_to_ptr.vmem [resolvable:$true] %s1373
          %s1375 = sshll.u32 %s1371, 4
          %s1376 = int_to_ptr.hbm [resolvable:$true] %s1375
          %1378 = dma.vmem_to_hbm [thread:$0]  %s1374, 64, %s1376, %s1349
        $region112: #{tpu_custom_call.1} parent=83 // pred_fallthru
          _
        // Predicated region
        $region113: #{tpu_custom_call.1} parent=83 // pred_check
          %p1379 = pneg %p502
        $region114: #{tpu_custom_call.1} parent=83 // pred_check_branch
          %1381 = sbr.rel (%p1379) target = $region116
        $region115: #{tpu_custom_call.1} parent=83 // pred_region
          %1383 = vsyncadd %s1354, 0
          %s1384 = smul.addr %s47, 8
          %s1385 = scalar_lea.hbm %s17, %s1384
          %s1387 = sshll.u32 %s1357, 4
          %s1388 = int_to_ptr.vmem [resolvable:$true] %s1387
          %s1389 = sshll.u32 %s1385, 4
          %s1390 = int_to_ptr.hbm [resolvable:$true] %s1389
          %1392 = dma.vmem_to_hbm [thread:$0]  %s1388, 128, %s1390, %s1354
        $region116: #{tpu_custom_call.1} parent=83 // pred_fallthru
          _
        // Predicated region
        $region117: #{tpu_custom_call.1} parent=83 // pred_check
          %p1393 = pneg %p530
        $region118: #{tpu_custom_call.1} parent=83 // pred_check_branch
          %1395 = sbr.rel (%p1393) target = $region120
        $region119: #{tpu_custom_call.1} parent=83 // pred_region
          %1397 = vsyncadd %s1359, 0
          %s1398 = smul.addr %s47, 2
          %s1399 = smul.addr %s48, 4
          %s1400 = sadd.s32 %s1398, %s1399
          %s1401 = smul.addr %s1400, 4
          %s1402 = scalar_lea.hbm %s18, %s1401
          %s1403 = sshll.u32 %s1362, 4
          %s1404 = int_to_ptr.vmem [resolvable:$true] %s1403
          %s1405 = sshll.u32 %s1402, 4
          %s1406 = int_to_ptr.hbm [resolvable:$true] %s1405
          %1411 = dma.vmem_to_hbm [thread:$0]  %s1404, 128, %s1406, %s1359, 64, 64, 4
        $region120: #{tpu_custom_call.1} parent=83 // pred_fallthru
          _
      $region84: #{tpu_custom_call.1} parent=5 // pred_fallthru
        _
      %p1412 = scmp.le.s32.totalorder 2, %s38
      // Predicated region
      $region121: #{tpu_custom_call.1} parent=5 // pred_check
        %p1413 = pneg %p1412
      $region122: #{tpu_custom_call.1} parent=5 // pred_check_branch
        %1415 = sbr.rel (%p1413) target = $region124
      $region123: #{tpu_custom_call.1} parent=5 // pred_region
        %s1416 = ssub.s32 %s38, 2
        // Predicated region
        $region125: #{tpu_custom_call.1} parent=123 // pred_check
          %p1417 = pneg %p482
        $region126: #{tpu_custom_call.1} parent=123 // pred_check_branch
          %1419 = sbr.rel (%p1417) target = $region128
        $region127: #{tpu_custom_call.1} parent=123 // pred_region
          %s1420 = sand.u32 %s467, 1
          %s1421 = scalar_lea.sflag [#allocation5], %s1420
          %s1422 = sand.u32 %s467, 1
          %s1423 = smul.addr %s1422, 4
          %s1424 = scalar_lea.vmem [#allocation12], %s1423
          %1426 = dma.done %s1421, 64
        $region128: #{tpu_custom_call.1} parent=123 // pred_fallthru
          _
        // Predicated region
        $region129: #{tpu_custom_call.1} parent=123 // pred_check
          %p1427 = pneg %p508
        $region130: #{tpu_custom_call.1} parent=123 // pred_check_branch
          %1429 = sbr.rel (%p1427) target = $region132
        $region131: #{tpu_custom_call.1} parent=123 // pred_region
          %s1430 = sand.u32 %s44, 1
          %s1431 = scalar_lea.sflag [#allocation14], %s1430
          %s1432 = sand.u32 %s493, 1
          %s1433 = smul.addr %s1432, 8
          %s1434 = scalar_lea.vmem [#allocation13], %s1433
          %1436 = dma.done %s1431, 128
        $region132: #{tpu_custom_call.1} parent=123 // pred_fallthru
          _
        // Predicated region
        $region133: #{tpu_custom_call.1} parent=123 // pred_check
          %p1437 = pneg %p536
        $region134: #{tpu_custom_call.1} parent=123 // pred_check_branch
          %1439 = sbr.rel (%p1437) target = $region136
        $region135: #{tpu_custom_call.1} parent=123 // pred_region
          %s1440 = sand.u32 %s44, 1
          %s1441 = scalar_lea.sflag [#allocation14], %s1440
          %s1442 = sand.u32 %s521, 1
          %s1443 = smul.addr %s1442, 8
          %s1444 = scalar_lea.vmem [#allocation15], %s1443
          %1446 = dma.done %s1441, 128
        $region136: #{tpu_custom_call.1} parent=123 // pred_fallthru
          _
      $region124: #{tpu_custom_call.1} parent=5 // pred_fallthru
        _
    $region6: #{tpu_custom_call.1} parent=1 // loop_footer
      %s42 = sadd.s32 1, %s38
    $region7: #{tpu_custom_call.1} parent=1 // loop_footer_branch
      %37 = sbr.rel target = $region3
    $region8: #{tpu_custom_call.1} parent=1 // loop_exit
      _
    %1447 = vsyncpa [#allocation4], 1
    %s1448 = scalar_lea.sflag [#allocation4], 1
    %1449 = vsyncpa %s1448, 1
    %1450 = vsyncpa [#allocation7], 1
    %1451 = vsyncpa [#allocation10], 1
    %s1452 = scalar_lea.sflag [#allocation10], 1
    %1453 = vsyncpa %s1452, 1
    %1454 = vsyncpa [#allocation5], 1
    %s1455 = scalar_lea.sflag [#allocation5], 1
    %1456 = vsyncpa %s1455, 1
    %1457 = vsyncpa [#allocation14], 1
    %s1458 = scalar_lea.sflag [#allocation14], 1
    %1459 = vsyncpa %s1458, 1

</llo_original>
